<compile_context>
chip_gen: v7x
topology: tpu7x:2x2x1
jax: 0.10.0
libtpu: 0.0.40
codegen_flags: <defaults>
</compile_context>

<pallas_src>
import jax
import jax.numpy as jnp
from jax.experimental import pallas as pl
from jax.experimental.pallas import tpu as pltpu


def decoder_kernel(x_ref, h_ref, enc_ref,
                   wih_ref, whh_ref, bih_ref, bhh_ref,
                   w1_ref, b1_ref, w2_ref, b2_ref,
                   logits_ref, state_ref,
                   a1_ref):
    H = h_ref.shape[-1]

    # ---- prologue: GRU cell + attention + fc1, only on the first vocab tile ----
    @pl.when(pl.program_id(0) == 0)
    def _prologue():
        x = x_ref[...]                         # (Bp, E)    bf16 embedded token
        h = h_ref[...]                         # (Bp, H)    f32 previous hidden
        enc = enc_ref[...]                     # (Bp, S, H) bf16 encoder outputs

        # GRU cell (PyTorch gate order r, z, n); MXU dots, gate math in f32.
        gi = jnp.dot(x, wih_ref[...],
                     preferred_element_type=jnp.float32) + bih_ref[...]
        gh = jnp.dot(h.astype(jnp.bfloat16), whh_ref[...],
                     preferred_element_type=jnp.float32) + bhh_ref[...]
        i_r, i_z, i_n = gi[:, :H], gi[:, H:2 * H], gi[:, 2 * H:]
        h_r, h_z, h_n = gh[:, :H], gh[:, H:2 * H], gh[:, 2 * H:]
        r = jax.nn.sigmoid(i_r + h_r)
        z = jax.nn.sigmoid(i_z + h_z)
        n = jnp.tanh(i_n + r * h_n)
        h_new = (1.0 - z) * n + z * h          # (Bp, H) f32 == GRU output (seq len 1)

        # Dot-product attention on the MXU (rank-3 einsums, query length 1).
        q3 = h_new[:, None, :].astype(jnp.bfloat16)                       # (Bp,1,H)
        scores = jnp.einsum('bqh,bsh->bqs', q3, enc,
                            preferred_element_type=jnp.float32)           # (Bp,1,S)
        scores = scores - jnp.max(scores, axis=-1, keepdims=True)
        p = jnp.exp(scores)
        inv = pl.reciprocal(jnp.sum(p, axis=-1, keepdims=True), approx=True)
        attn = (p * inv).astype(jnp.bfloat16)                             # (Bp,1,S)
        ctx3 = jnp.einsum('bqs,bsh->bqh', attn, enc,
                          preferred_element_type=jnp.float32)             # (Bp,1,H)
        context = jnp.sum(ctx3, axis=1)                                   # (Bp,H)

        # fc1 on cat([h_new, context]) -> split w1 rows with static ref slices.
        w1_h = w1_ref[0:H, :]                  # (H, H) bf16, acts on GRU output
        w1_c = w1_ref[H:2 * H, :]              # (H, H) bf16, acts on context
        z1 = (jnp.dot(h_new.astype(jnp.bfloat16), w1_h,
                      preferred_element_type=jnp.float32)
              + jnp.dot(context.astype(jnp.bfloat16), w1_c,
                        preferred_element_type=jnp.float32)
              + b1_ref[...])
        a1_ref[...] = jnp.tanh(z1).astype(a1_ref.dtype)
        # Dropout(p=0.25) is identity in eval mode.
        # TODO(synk): training-mode dropout (pltpu.prng_*) not implemented.

        state_ref[...] = h_new.astype(state_ref.dtype)

    # ---- fc2: one lane-dense vocab tile per grid step (w2 streamed over V) ----
    logits_ref[...] = (jnp.dot(a1_ref[...], w2_ref[...],
                               preferred_element_type=jnp.float32)
                       + b2_ref[...]).astype(logits_ref.dtype)


def init_params(key, vocab_size, embedding_dim, hidden_size):
    ks = jax.random.split(key, 8)
    H, E, V = hidden_size, embedding_dim, vocab_size
    s = 0.1
    f32, bf16 = jnp.float32, jnp.bfloat16
    return {
        "embedding": jax.random.normal(ks[0], (V, E), f32) * s,
        # Weights pre-transposed to (in, out) layout and stored in bf16.
        "w_ih_t": (jax.random.normal(ks[1], (3 * H, E), f32) * s).T.astype(bf16),  # (E, 3H)
        "w_hh_t": (jax.random.normal(ks[2], (3 * H, H), f32) * s).T.astype(bf16),  # (H, 3H)
        "b_ih":   jax.random.normal(ks[3], (1, 3 * H), f32) * s,
        "b_hh":   jax.random.normal(ks[4], (1, 3 * H), f32) * s,
        "w1_t":   (jax.random.normal(ks[5], (H, 2 * H), f32) * s).T.astype(bf16),  # (2H, H)
        "b1":     jnp.zeros((1, H), f32),
        "w2_t":   (jax.random.normal(ks[6], (V, H), f32) * s).T.astype(bf16),      # (H, V)
        "b2":     jnp.zeros((1, V), f32),
    }


def _pick_vocab_tile(V):
    # Lane-dense fc2 tile: largest of these 128-multiples that divides V,
    # otherwise keep the whole vocab resident (small-V case).
    for cand in (1024, 512, 256, 128):
        if V % cand == 0:
            return cand
    return V


def decoder_forward(ipt, hidden, enc_output, params):
    B = ipt.shape[0]
    H = hidden.shape[-1]
    V, E = params["embedding"].shape
    S = enc_output.shape[1]

    # Glue (plain JAX): embedding gather, hidden squeeze, bf16 cast,
    # batch padding up to the 8-row sublane tile (unmasked matmuls/stores).
    x = params["embedding"][ipt[:, 0]].astype(jnp.bfloat16)    # (B, E)
    h0 = hidden[0]                                             # (B, H) f32
    enc = enc_output.astype(jnp.bfloat16)                      # (B, S, H)

    Bp = max(8, ((B + 7) // 8) * 8)
    if Bp != B:
        pad = Bp - B
        x = jnp.pad(x, ((0, pad), (0, 0)))
        h0 = jnp.pad(h0, ((0, pad), (0, 0)))
        enc = jnp.pad(enc, ((0, pad), (0, 0), (0, 0)))

    tv = _pick_vocab_tile(V)
    grid = (V // tv,)

    grid_spec = pltpu.PrefetchScalarGridSpec(
        num_scalar_prefetch=0,
        grid=grid,
        in_specs=[
            pl.BlockSpec((Bp, E), lambda j: (0, 0)),          # x
            pl.BlockSpec((Bp, H), lambda j: (0, 0)),          # h0
            pl.BlockSpec((Bp, S, H), lambda j: (0, 0, 0)),    # enc
            pl.BlockSpec((E, 3 * H), lambda j: (0, 0)),       # w_ih_t
            pl.BlockSpec((H, 3 * H), lambda j: (0, 0)),       # w_hh_t
            pl.BlockSpec((1, 3 * H), lambda j: (0, 0)),       # b_ih
            pl.BlockSpec((1, 3 * H), lambda j: (0, 0)),       # b_hh
            pl.BlockSpec((2 * H, H), lambda j: (0, 0)),       # w1_t (split in-kernel)
            pl.BlockSpec((1, H), lambda j: (0, 0)),           # b1
            pl.BlockSpec((H, tv), lambda j: (0, j)),          # w2_t streamed over V
            pl.BlockSpec((1, tv), lambda j: (0, j)),          # b2 streamed over V
        ],
        out_specs=(
            pl.BlockSpec((Bp, tv), lambda j: (0, j)),         # logits: lane-dense tile
            pl.BlockSpec((Bp, H), lambda j: (0, 0)),          # h_new: resident across tiles
        ),
        scratch_shapes=[pltpu.VMEM((Bp, H), jnp.bfloat16)],   # a1 (fc1 activation)
    )

    logits_p, h_new = pl.pallas_call(
        decoder_kernel,
        out_shape=(jax.ShapeDtypeStruct((Bp, V), jnp.float32),
                   jax.ShapeDtypeStruct((Bp, H), jnp.float32)),
        grid_spec=grid_spec,
        compiler_params=pltpu.CompilerParams(
            dimension_semantics=("arbitrary",),   # state/a1 carried across vocab tiles
            vmem_limit_bytes=32 * 1024 * 1024),
    )(x, h0, enc,
      params["w_ih_t"], params["w_hh_t"], params["b_ih"], params["b_hh"],
      params["w1_t"], params["b1"], params["w2_t"], params["b2"])

    logits = logits_p[:B]                     # drop batch padding
    state = h_new[:B][None, :, :]             # (1, B, H), like PyTorch GRU state
    return logits, state


if __name__ == "__main__":
    vocab_size, embedding_dim, hidden_size = 64, 16, 32
    B, S = 2, 8

    key = jax.random.PRNGKey(0)
    kp, ki, kh, ke = jax.random.split(key, 4)

    params = init_params(kp, vocab_size, embedding_dim, hidden_size)
    ipt = jax.random.randint(ki, (B, 1), 0, vocab_size, dtype=jnp.int32)
    hidden = jax.random.normal(kh, (1, B, hidden_size), jnp.float32)
    enc_output = jax.random.normal(ke, (B, S, hidden_size), jnp.float32)

    fwd = jax.jit(decoder_forward)
    logits, state = fwd(ipt, hidden, enc_output, params)
    jax.block_until_ready((logits, state))

    assert logits.shape == (B, vocab_size)
    assert state.shape == (1, B, hidden_size)
    assert bool(jnp.all(jnp.isfinite(logits))) and bool(jnp.all(jnp.isfinite(state)))
    print("KERNEL_OK")
</pallas_src>

<mosaic_0001>
module attributes {stable_mosaic.version = 11 : i64} {
  func.func @decoder_kernel(%arg0: i32, %arg1: memref<8x16xbf16, #tpu.memory_space<vmem>>, %arg2: memref<8x32xf32, #tpu.memory_space<vmem>>, %arg3: memref<8x8x32xbf16, #tpu.memory_space<vmem>>, %arg4: memref<16x96xbf16, #tpu.memory_space<vmem>>, %arg5: memref<32x96xbf16, #tpu.memory_space<vmem>>, %arg6: memref<1x96xf32, #tpu.memory_space<vmem>>, %arg7: memref<1x96xf32, #tpu.memory_space<vmem>>, %arg8: memref<64x32xbf16, #tpu.memory_space<vmem>>, %arg9: memref<1x32xf32, #tpu.memory_space<vmem>>, %arg10: memref<32x64xbf16, #tpu.memory_space<vmem>>, %arg11: memref<1x64xf32, #tpu.memory_space<vmem>>, %arg12: memref<8x64xf32, #tpu.memory_space<vmem>>, %arg13: memref<8x32xf32, #tpu.memory_space<vmem>>, %arg14: memref<8x32xbf16, #tpu.memory_space<vmem>>) attributes {dimension_semantics = [#tpu.dimension_semantics<arbitrary>], iteration_bounds = array<i64: 1>, scalar_prefetch = 0 : i64, scratch_operands = 1 : i64, tpu.core_type = #tpu.core_type<tc>, window_params = [{pipeline_mode = #tpu.pipeline_mode<synchronous>, transform_indices = @transform_0, window_bounds = array<i64: 8, 16>}, {pipeline_mode = #tpu.pipeline_mode<synchronous>, transform_indices = @transform_1, window_bounds = array<i64: 8, 32>}, {pipeline_mode = #tpu.pipeline_mode<synchronous>, transform_indices = @transform_2, window_bounds = array<i64: 8, 8, 32>}, {pipeline_mode = #tpu.pipeline_mode<synchronous>, transform_indices = @transform_3, window_bounds = array<i64: 16, 96>}, {pipeline_mode = #tpu.pipeline_mode<synchronous>, transform_indices = @transform_4, window_bounds = array<i64: 32, 96>}, {pipeline_mode = #tpu.pipeline_mode<synchronous>, transform_indices = @transform_5, window_bounds = array<i64: 1, 96>}, {pipeline_mode = #tpu.pipeline_mode<synchronous>, transform_indices = @transform_6, window_bounds = array<i64: 1, 96>}, {pipeline_mode = #tpu.pipeline_mode<synchronous>, transform_indices = @transform_7, window_bounds = array<i64: 64, 32>}, {pipeline_mode = #tpu.pipeline_mode<synchronous>, transform_indices = @transform_8, window_bounds = array<i64: 1, 32>}, {transform_indices = @transform_9, window_bounds = array<i64: 32, 64>}, {transform_indices = @transform_10, window_bounds = array<i64: 1, 64>}, {transform_indices = @transform_11, window_bounds = array<i64: 8, 64>}, {pipeline_mode = #tpu.pipeline_mode<synchronous>, transform_indices = @transform_12, window_bounds = array<i64: 8, 32>}]} {
    %c0_i32 = arith.constant 0 : i32
    %0 = arith.cmpi eq, %arg0, %c0_i32 : i32
    %1 = arith.extui %0 : i1 to i32
    %c0_i32_0 = arith.constant 0 : i32
    %2 = arith.cmpi ne, %1, %c0_i32_0 : i32
    scf.if %2 {
      %c0_8 = arith.constant 0 : index
      %c0_9 = arith.constant 0 : index
      %10 = vector.load %arg1[%c0_8, %c0_9] : memref<8x16xbf16, #tpu.memory_space<vmem>>, vector<8x16xbf16>
      %c0_10 = arith.constant 0 : index
      %c0_11 = arith.constant 0 : index
      %11 = vector.load %arg2[%c0_10, %c0_11] : memref<8x32xf32, #tpu.memory_space<vmem>>, vector<8x32xf32>
      %c0_12 = arith.constant 0 : index
      %c0_13 = arith.constant 0 : index
      %c0_14 = arith.constant 0 : index
      %12 = vector.load %arg3[%c0_12, %c0_13, %c0_14] : memref<8x8x32xbf16, #tpu.memory_space<vmem>>, vector<8x8x32xbf16>
      %c0_15 = arith.constant 0 : index
      %c0_16 = arith.constant 0 : index
      %13 = vector.load %arg4[%c0_15, %c0_16] : memref<16x96xbf16, #tpu.memory_space<vmem>>, vector<16x96xbf16>
      %cst_17 = arith.constant dense<0.000000e+00> : vector<8x96xf32>
      %14 = tpu.matmul %10, %13, %cst_17 {dimension_numbers = #tpu.dot_dimension_numbers<[1], [0], [0], [1], [0, 0, 1, 1], [], []>} : vector<8x16xbf16>, vector<16x96xbf16>, vector<8x96xf32> -> vector<8x96xf32>
      %c0_18 = arith.constant 0 : index
      %c0_19 = arith.constant 0 : index
      %15 = vector.load %arg6[%c0_18, %c0_19] : memref<1x96xf32, #tpu.memory_space<vmem>>, vector<1x96xf32>
      %16 = vector.broadcast %15 : vector<1x96xf32> to vector<8x96xf32>
      %17 = arith.addf %14, %16 : vector<8x96xf32>
      %18 = arith.truncf %11 : vector<8x32xf32> to vector<8x32xbf16>
      %c0_20 = arith.constant 0 : index
      %c0_21 = arith.constant 0 : index
      %19 = vector.load %arg5[%c0_20, %c0_21] : memref<32x96xbf16, #tpu.memory_space<vmem>>, vector<32x96xbf16>
      %cst_22 = arith.constant dense<0.000000e+00> : vector<8x96xf32>
      %20 = tpu.matmul %18, %19, %cst_22 {dimension_numbers = #tpu.dot_dimension_numbers<[1], [0], [0], [1], [0, 0, 1, 1], [], []>} : vector<8x32xbf16>, vector<32x96xbf16>, vector<8x96xf32> -> vector<8x96xf32>
      %c0_23 = arith.constant 0 : index
      %c0_24 = arith.constant 0 : index
      %21 = vector.load %arg7[%c0_23, %c0_24] : memref<1x96xf32, #tpu.memory_space<vmem>>, vector<1x96xf32>
      %22 = vector.broadcast %21 : vector<1x96xf32> to vector<8x96xf32>
      %23 = arith.addf %20, %22 : vector<8x96xf32>
      %24 = vector.extract_strided_slice %17 {offsets = [0, 0], sizes = [8, 32], strides = [1, 1]} : vector<8x96xf32> to vector<8x32xf32>
      %25 = vector.extract_strided_slice %17 {offsets = [0, 32], sizes = [8, 32], strides = [1, 1]} : vector<8x96xf32> to vector<8x32xf32>
      %26 = vector.extract_strided_slice %17 {offsets = [0, 64], sizes = [8, 32], strides = [1, 1]} : vector<8x96xf32> to vector<8x32xf32>
      %27 = vector.extract_strided_slice %23 {offsets = [0, 0], sizes = [8, 32], strides = [1, 1]} : vector<8x96xf32> to vector<8x32xf32>
      %28 = vector.extract_strided_slice %23 {offsets = [0, 32], sizes = [8, 32], strides = [1, 1]} : vector<8x96xf32> to vector<8x32xf32>
      %29 = vector.extract_strided_slice %23 {offsets = [0, 64], sizes = [8, 32], strides = [1, 1]} : vector<8x96xf32> to vector<8x32xf32>
      %30 = arith.addf %24, %27 : vector<8x32xf32>
      %31 = arith.negf %30 : vector<8x32xf32>
      %32 = math.exp %31 : vector<8x32xf32>
      %cst_25 = arith.constant 1.000000e+00 : f32
      %33 = vector.broadcast %cst_25 : f32 to vector<8x32xf32>
      %34 = arith.addf %33, %32 : vector<8x32xf32>
      %35 = arith.divf %33, %34 : vector<8x32xf32>
      %36 = arith.addf %25, %28 : vector<8x32xf32>
      %37 = arith.negf %36 : vector<8x32xf32>
      %38 = math.exp %37 : vector<8x32xf32>
      %cst_26 = arith.constant 1.000000e+00 : f32
      %39 = vector.broadcast %cst_26 : f32 to vector<8x32xf32>
      %40 = arith.addf %39, %38 : vector<8x32xf32>
      %41 = arith.divf %39, %40 : vector<8x32xf32>
      %42 = arith.mulf %35, %29 : vector<8x32xf32>
      %43 = arith.addf %26, %42 : vector<8x32xf32>
      %44 = math.tanh %43 : vector<8x32xf32>
      %cst_27 = arith.constant 1.000000e+00 : f32
      %45 = vector.broadcast %cst_27 : f32 to vector<8x32xf32>
      %46 = arith.subf %45, %41 : vector<8x32xf32>
      %47 = arith.mulf %46, %44 : vector<8x32xf32>
      %48 = arith.mulf %41, %11 : vector<8x32xf32>
      %49 = arith.addf %47, %48 : vector<8x32xf32>
      %50 = vector.shape_cast %49 : vector<8x32xf32> to vector<8x1x32xf32>
      %51 = arith.truncf %50 : vector<8x1x32xf32> to vector<8x1x32xbf16>
      "tpu.trace_start"() <{level = 10 : i32, message = "bqh,bsh->bqs"}> : () -> ()
      %cst_28 = arith.constant dense<0.000000e+00> : vector<8x1x8xf32>
      %52 = tpu.matmul %51, %12, %cst_28 {dimension_numbers = #tpu.dot_dimension_numbers<[2], [2], [1], [1], [0, 0, 0, 1, 1, 1], [0], [0]>} : vector<8x1x32xbf16>, vector<8x8x32xbf16>, vector<8x1x8xf32> -> vector<8x1x8xf32>
      "tpu.trace_stop"() : () -> ()
      %cst_29 = arith.constant dense<0xFF800000> : vector<8x1xf32>
      %53 = vector.multi_reduction <maximumf>, %52, %cst_29 [2] : vector<8x1x8xf32> to vector<8x1xf32>
      %54 = vector.shape_cast %53 : vector<8x1xf32> to vector<8x1x1xf32>
      %55 = vector.broadcast %54 : vector<8x1x1xf32> to vector<8x1x8xf32>
      %56 = arith.subf %52, %55 : vector<8x1x8xf32>
      %57 = math.exp %56 : vector<8x1x8xf32>
      %cst_30 = arith.constant dense<0.000000e+00> : vector<8x1xf32>
      %58 = vector.multi_reduction <add>, %57, %cst_30 [2] : vector<8x1x8xf32> to vector<8x1xf32>
      %59 = vector.shape_cast %58 : vector<8x1xf32> to vector<8x1x1xf32>
      %60 = tpu.reciprocal %59 {approx = true} : vector<8x1x1xf32> -> vector<8x1x1xf32>
      %61 = vector.broadcast %60 : vector<8x1x1xf32> to vector<8x1x8xf32>
      %62 = arith.mulf %57, %61 : vector<8x1x8xf32>
      %63 = arith.truncf %62 : vector<8x1x8xf32> to vector<8x1x8xbf16>
      "tpu.trace_start"() <{level = 10 : i32, message = "bqs,bsh->bqh"}> : () -> ()
      %cst_31 = arith.constant dense<0.000000e+00> : vector<8x1x32xf32>
      %64 = tpu.matmul %63, %12, %cst_31 {dimension_numbers = #tpu.dot_dimension_numbers<[2], [1], [1], [2], [0, 0, 0, 1, 1, 2], [0], [0]>} : vector<8x1x8xbf16>, vector<8x8x32xbf16>, vector<8x1x32xf32> -> vector<8x1x32xf32>
      "tpu.trace_stop"() : () -> ()
      %cst_32 = arith.constant dense<0.000000e+00> : vector<8x32xf32>
      %65 = vector.multi_reduction <add>, %64, %cst_32 [1] : vector<8x1x32xf32> to vector<8x32xf32>
      %c0_33 = arith.constant 0 : index
      %c0_34 = arith.constant 0 : index
      %66 = vector.load %arg8[%c0_33, %c0_34] : memref<64x32xbf16, #tpu.memory_space<vmem>>, vector<32x32xbf16>
      %c32 = arith.constant 32 : index
      %c0_35 = arith.constant 0 : index
      %67 = vector.load %arg8[%c32, %c0_35] : memref<64x32xbf16, #tpu.memory_space<vmem>>, vector<32x32xbf16>
      %68 = arith.truncf %49 : vector<8x32xf32> to vector<8x32xbf16>
      %cst_36 = arith.constant dense<0.000000e+00> : vector<8x32xf32>
      %69 = tpu.matmul %68, %66, %cst_36 {dimension_numbers = #tpu.dot_dimension_numbers<[1], [0], [0], [1], [0, 0, 1, 1], [], []>} : vector<8x32xbf16>, vector<32x32xbf16>, vector<8x32xf32> -> vector<8x32xf32>
      %70 = arith.truncf %65 : vector<8x32xf32> to vector<8x32xbf16>
      %cst_37 = arith.constant dense<0.000000e+00> : vector<8x32xf32>
      %71 = tpu.matmul %70, %67, %cst_37 {dimension_numbers = #tpu.dot_dimension_numbers<[1], [0], [0], [1], [0, 0, 1, 1], [], []>} : vector<8x32xbf16>, vector<32x32xbf16>, vector<8x32xf32> -> vector<8x32xf32>
      %72 = arith.addf %69, %71 : vector<8x32xf32>
      %c0_38 = arith.constant 0 : index
      %c0_39 = arith.constant 0 : index
      %73 = vector.load %arg9[%c0_38, %c0_39] : memref<1x32xf32, #tpu.memory_space<vmem>>, vector<1x32xf32>
      %74 = vector.broadcast %73 : vector<1x32xf32> to vector<8x32xf32>
      %75 = arith.addf %72, %74 : vector<8x32xf32>
      %76 = math.tanh %75 : vector<8x32xf32>
      %77 = arith.truncf %76 : vector<8x32xf32> to vector<8x32xbf16>
      %c0_40 = arith.constant 0 : index
      %c0_41 = arith.constant 0 : index
      %78 = vector.load %arg14[%c0_40, %c0_41] : memref<8x32xbf16, #tpu.memory_space<vmem>>, vector<8x32xbf16>
      tpu.vector_store %arg14[%c0_40, %c0_41], %77 {strides = array<i32>} : memref<8x32xbf16, #tpu.memory_space<vmem>>, vector<8x32xbf16>,
      %c0_42 = arith.constant 0 : index
      %c0_43 = arith.constant 0 : index
      %79 = vector.load %arg13[%c0_42, %c0_43] : memref<8x32xf32, #tpu.memory_space<vmem>>, vector<8x32xf32>
      tpu.vector_store %arg13[%c0_42, %c0_43], %49 {strides = array<i32>} : memref<8x32xf32, #tpu.memory_space<vmem>>, vector<8x32xf32>,
    } else {
    }
    %c0 = arith.constant 0 : index
    %c0_1 = arith.constant 0 : index
    %3 = vector.load %arg14[%c0, %c0_1] : memref<8x32xbf16, #tpu.memory_space<vmem>>, vector<8x32xbf16>
    %c0_2 = arith.constant 0 : index
    %c0_3 = arith.constant 0 : index
    %4 = vector.load %arg10[%c0_2, %c0_3] : memref<32x64xbf16, #tpu.memory_space<vmem>>, vector<32x64xbf16>
    %cst = arith.constant dense<0.000000e+00> : vector<8x64xf32>
    %5 = tpu.matmul %3, %4, %cst {dimension_numbers = #tpu.dot_dimension_numbers<[1], [0], [0], [1], [0, 0, 1, 1], [], []>} : vector<8x32xbf16>, vector<32x64xbf16>, vector<8x64xf32> -> vector<8x64xf32>
    %c0_4 = arith.constant 0 : index
    %c0_5 = arith.constant 0 : index
    %6 = vector.load %arg11[%c0_4, %c0_5] : memref<1x64xf32, #tpu.memory_space<vmem>>, vector<1x64xf32>
    %7 = vector.broadcast %6 : vector<1x64xf32> to vector<8x64xf32>
    %8 = arith.addf %5, %7 : vector<8x64xf32>
    %c0_6 = arith.constant 0 : index
    %c0_7 = arith.constant 0 : index
    %9 = vector.load %arg12[%c0_6, %c0_7] : memref<8x64xf32, #tpu.memory_space<vmem>>, vector<8x64xf32>
    tpu.vector_store %arg12[%c0_6, %c0_7], %8 {strides = array<i32>} : memref<8x64xf32, #tpu.memory_space<vmem>>, vector<8x64xf32>,
    return
  }
  func.func @transform_0(%arg0: i32) -> (i32, i32) {
    %c0_i32 = arith.constant 0 : i32
    %c0_i32_0 = arith.constant 0 : i32
    %c0_i32_1 = arith.constant 0 : i32
    return %c0_i32, %c0_i32_0 : i32, i32
  }
  func.func @transform_1(%arg0: i32) -> (i32, i32) {
    %c0_i32 = arith.constant 0 : i32
    %c0_i32_0 = arith.constant 0 : i32
    %c0_i32_1 = arith.constant 0 : i32
    return %c0_i32, %c0_i32_0 : i32, i32
  }
  func.func @transform_2(%arg0: i32) -> (i32, i32, i32) {
    %c0_i32 = arith.constant 0 : i32
    %c0_i32_0 = arith.constant 0 : i32
    %c0_i32_1 = arith.constant 0 : i32
    %c0_i32_2 = arith.constant 0 : i32
    return %c0_i32, %c0_i32_0, %c0_i32_1 : i32, i32, i32
  }
  func.func @transform_3(%arg0: i32) -> (i32, i32) {
    %c0_i32 = arith.constant 0 : i32
    %c0_i32_0 = arith.constant 0 : i32
    %c0_i32_1 = arith.constant 0 : i32
    return %c0_i32, %c0_i32_0 : i32, i32
  }
  func.func @transform_4(%arg0: i32) -> (i32, i32) {
    %c0_i32 = arith.constant 0 : i32
    %c0_i32_0 = arith.constant 0 : i32
    %c0_i32_1 = arith.constant 0 : i32
    return %c0_i32, %c0_i32_0 : i32, i32
  }
  func.func @transform_5(%arg0: i32) -> (i32, i32) {
    %c0_i32 = arith.constant 0 : i32
    %c0_i32_0 = arith.constant 0 : i32
    %c0_i32_1 = arith.constant 0 : i32
    return %c0_i32, %c0_i32_0 : i32, i32
  }
  func.func @transform_6(%arg0: i32) -> (i32, i32) {
    %c0_i32 = arith.constant 0 : i32
    %c0_i32_0 = arith.constant 0 : i32
    %c0_i32_1 = arith.constant 0 : i32
    return %c0_i32, %c0_i32_0 : i32, i32
  }
  func.func @transform_7(%arg0: i32) -> (i32, i32) {
    %c0_i32 = arith.constant 0 : i32
    %c0_i32_0 = arith.constant 0 : i32
    %c0_i32_1 = arith.constant 0 : i32
    return %c0_i32, %c0_i32_0 : i32, i32
  }
  func.func @transform_8(%arg0: i32) -> (i32, i32) {
    %c0_i32 = arith.constant 0 : i32
    %c0_i32_0 = arith.constant 0 : i32
    %c0_i32_1 = arith.constant 0 : i32
    return %c0_i32, %c0_i32_0 : i32, i32
  }
  func.func @transform_9(%arg0: i32) -> (i32, i32) {
    %c0_i32 = arith.constant 0 : i32
    %c0_i32_0 = arith.constant 0 : i32
    return %c0_i32, %arg0 : i32, i32
  }
  func.func @transform_10(%arg0: i32) -> (i32, i32) {
    %c0_i32 = arith.constant 0 : i32
    %c0_i32_0 = arith.constant 0 : i32
    return %c0_i32, %arg0 : i32, i32
  }
  func.func @transform_11(%arg0: i32) -> (i32, i32) {
    %c0_i32 = arith.constant 0 : i32
    %c0_i32_0 = arith.constant 0 : i32
    return %c0_i32, %arg0 : i32, i32
  }
  func.func @transform_12(%arg0: i32) -> (i32, i32) {
    %c0_i32 = arith.constant 0 : i32
    %c0_i32_0 = arith.constant 0 : i32
    %c0_i32_1 = arith.constant 0 : i32
    return %c0_i32, %c0_i32_0 : i32, i32
  }
}

</mosaic_0001>

<llo_original>
// kernel: decoder_forward.1
$region0: #{decoder_forward.1}
  #allocation0 [shape = 'u32[]', space=smem, size = 0x4, offset = 0x4, fixed_abs, tag = 'smem constant byte address 0x4 - core index']
  #allocation1 [shape = 'u32[144,128]{1,0:T(1,128)}', space=vmem, size = 0x12000, scoped, tag = 'internal scratch']
  #allocation2 [shape = 'bf16[8,32]{1,0:T(8,128)(2,1)}', space=vmem, size = 0x800, scoped, tag = 'scratch operand']
  %s0 = inlined_call_operand.vmem [shape: bf16[8,16], index: 0, kind: input, shape index: {}]
  %s1 = inlined_call_operand.vmem [shape: f32[8,32], index: 1, kind: input, shape index: {}]
  %s2 = inlined_call_operand.vmem [shape: bf16[8,8,32], index: 2, kind: input, shape index: {}]
  %s3 = inlined_call_operand.vmem [shape: bf16[16,96], index: 3, kind: input, shape index: {}]
  %s4 = inlined_call_operand.vmem [shape: bf16[32,96], index: 4, kind: input, shape index: {}]
  %s5 = inlined_call_operand.vmem [shape: f32[1,96], index: 5, kind: input, shape index: {}]
  %s6 = inlined_call_operand.vmem [shape: f32[1,96], index: 6, kind: input, shape index: {}]
  %s7 = inlined_call_operand.vmem [shape: bf16[64,32], index: 7, kind: input, shape index: {}]
  %s8 = inlined_call_operand.vmem [shape: f32[1,32], index: 8, kind: input, shape index: {}]
  %s9 = inlined_call_operand.vmem [shape: bf16[32,64], index: 9, kind: input, shape index: {}]
  %s10 = inlined_call_operand.vmem [shape: f32[1,64], index: 10, kind: input, shape index: {}]
  %s11 = inlined_call_operand.vmem [shape: f32[8,64], index: 11, kind: output, shape index: {0}]
  %s12 = inlined_call_operand.vmem [shape: f32[8,32], index: 12, kind: output, shape index: {1}]
  %13 = xla_tuple %s11, %s12
  %s14 = sld [smem:[#allocation0]]
  $region66: #{decoder_forward.1} parent=0
    _
  %s16 = ssub.s32 1, %s14
  %s17 = scalar_select 0, %s16, %s14
  // Predicated region
  $region2: #{decoder_forward.1} parent=0 // pred_check
    _
  $region3: #{decoder_forward.1} parent=0 // pred_check_branch
    %19 = sbr.rel (0) target = $region5
  $region4: #{decoder_forward.1} parent=0 // pred_region
    _
  $region5: #{decoder_forward.1} parent=0 // pred_fallthru
    _
  // Predicated region
  $region6: #{decoder_forward.1} parent=0 // pred_check
    _
  $region7: #{decoder_forward.1} parent=0 // pred_check_branch
    %21 = sbr.rel (0) target = $region9
  $region8: #{decoder_forward.1} parent=0 // pred_region
    _
  $region9: #{decoder_forward.1} parent=0 // pred_fallthru
    _
  // Predicated region
  $region10: #{decoder_forward.1} parent=0 // pred_check
    _
  $region11: #{decoder_forward.1} parent=0 // pred_check_branch
    %23 = sbr.rel (0) target = $region13
  $region12: #{decoder_forward.1} parent=0 // pred_region
    _
  $region13: #{decoder_forward.1} parent=0 // pred_fallthru
    _
  // Predicated region
  $region14: #{decoder_forward.1} parent=0 // pred_check
    _
  $region15: #{decoder_forward.1} parent=0 // pred_check_branch
    %25 = sbr.rel (0) target = $region17
  $region16: #{decoder_forward.1} parent=0 // pred_region
    _
  $region17: #{decoder_forward.1} parent=0 // pred_fallthru
    _
  // Predicated region
  $region18: #{decoder_forward.1} parent=0 // pred_check
    _
  $region19: #{decoder_forward.1} parent=0 // pred_check_branch
    %27 = sbr.rel (0) target = $region21
  $region20: #{decoder_forward.1} parent=0 // pred_region
    _
  $region21: #{decoder_forward.1} parent=0 // pred_fallthru
    _
  // Predicated region
  $region22: #{decoder_forward.1} parent=0 // pred_check
    _
  $region23: #{decoder_forward.1} parent=0 // pred_check_branch
    %29 = sbr.rel (0) target = $region25
  $region24: #{decoder_forward.1} parent=0 // pred_region
    _
  $region25: #{decoder_forward.1} parent=0 // pred_fallthru
    _
  // Predicated region
  $region26: #{decoder_forward.1} parent=0 // pred_check
    _
  $region27: #{decoder_forward.1} parent=0 // pred_check_branch
    %31 = sbr.rel (0) target = $region29
  $region28: #{decoder_forward.1} parent=0 // pred_region
    _
  $region29: #{decoder_forward.1} parent=0 // pred_fallthru
    _
  // Predicated region
  $region30: #{decoder_forward.1} parent=0 // pred_check
    _
  $region31: #{decoder_forward.1} parent=0 // pred_check_branch
    %33 = sbr.rel (0) target = $region33
  $region32: #{decoder_forward.1} parent=0 // pred_region
    _
  $region33: #{decoder_forward.1} parent=0 // pred_fallthru
    _
  // Predicated region
  $region34: #{decoder_forward.1} parent=0 // pred_check
    _
  $region35: #{decoder_forward.1} parent=0 // pred_check_branch
    %35 = sbr.rel (0) target = $region37
  $region36: #{decoder_forward.1} parent=0 // pred_region
    _
  $region37: #{decoder_forward.1} parent=0 // pred_fallthru
    _
  // Predicated region
  $region38: #{decoder_forward.1} parent=0 // pred_check
    _
  $region39: #{decoder_forward.1} parent=0 // pred_check_branch
    %37 = sbr.rel (0) target = $region41
  $region40: #{decoder_forward.1} parent=0 // pred_region
    _
  $region41: #{decoder_forward.1} parent=0 // pred_fallthru
    _
  // Predicated region
  $region42: #{decoder_forward.1} parent=0 // pred_check
    _
  $region43: #{decoder_forward.1} parent=0 // pred_check_branch
    %39 = sbr.rel (0) target = $region45
  $region44: #{decoder_forward.1} parent=0 // pred_region
    _
  $region45: #{decoder_forward.1} parent=0 // pred_fallthru
    _
  %p41 = scmp.eq.s32.totalorder 0, 0
  // Predicated region
  $region46: #{decoder_forward.1} parent=0 // pred_check
    %p42 = pneg %p41
  $region47: #{decoder_forward.1} parent=0 // pred_check_branch
    %44 = sbr.rel (%p42) target = $region49
  $region48: #{decoder_forward.1} parent=0 // pred_region
    %v45 = vld [vmem:[%s0] sm:$0xf]
    %v46 = vld [vmem:[%s1] sm:$0xff]
    %v47 = vld [vmem:[%s2] sm:$0xf]
    %v48 = vld [vmem:[%s2 + $0x4] sm:$0xf]
    %v49 = vld [vmem:[%s2 + $0x8] sm:$0xf]
    %v50 = vld [vmem:[%s2 + $0xc] sm:$0xf]
    %v51 = vld [vmem:[%s2 + $0x10] sm:$0xf]
    %v52 = vld [vmem:[%s2 + $0x14] sm:$0xf]
    %v53 = vld [vmem:[%s2 + $0x18] sm:$0xf]
    %v54 = vld [vmem:[%s2 + $0x1c] sm:$0xf]
    %v55 = vld [vmem:[%s3] sm:$0xf]
    %v56 = vld [vmem:[%s3 + $0x4] sm:$0xf]
    %v57 = vld [vmem:[%s5] sm:$0x1]
    %v59 = vlaneseq
    %v60 = vshrl.u32 %v59, 7
    %v61 = vsub.s32 0, %v60
    %v62 = vrot.slane %v57, %v61
    %v66 = vunpack.c.l.b16 %v55
    %v67 = vunpack.c.l.b16 %v56
    %v68 = vpack.c.b16 %v67, %v66
    %vm70 = vcmask 130048
    %v72 = vsel %vm70, %v45, 0
    %74 = vmatprep.subr.bf16.mxu0 0
    %75 = vmatpush1.bf16.msra.mxu0 %v68
    %76 = vmatprep.subr.bf16.mxu0 0
    %77 = vmatpush1.bf16.msra.mxu0 0
    %78 = vmatprep.subr.bf16.mxu0 0
    %79 = vmatpush1.bf16.msra.mxu0 0
    %80 = vmatprep.subr.bf16.mxu0 0
    %81 = vmatpush1.bf16.msra.mxu0 0
    %82 = vmatprep.subr.bf16.mxu0 0
    %83 = vmatpush1.bf16.msra.mxu0 0
    %84 = vmatprep.subr.bf16.mxu0 0
    %85 = vmatpush1.bf16.msra.mxu0 0
    %86 = vmatprep.subr.bf16.mxu0 0
    %87 = vmatpush1.bf16.msra.mxu0 0
    %88 = vmatprep.subr.bf16.mxu0 0
    %89 = vmatpush1.bf16.msra.mxu0 0
    %90 = vmatprep.subr.bf16.mxu0 0
    %91 = vmatpush1.bf16.msra.mxu0 0
    %92 = vmatprep.subr.bf16.mxu0 0
    %93 = vmatpush1.bf16.msra.mxu0 0
    %94 = vmatprep.subr.bf16.mxu0 0
    %95 = vmatpush1.bf16.msra.mxu0 0
    %96 = vmatprep.subr.bf16.mxu0 0
    %97 = vmatpush1.bf16.msra.mxu0 0
    %98 = vmatprep.subr.bf16.mxu0 0
    %99 = vmatpush1.bf16.msra.mxu0 0
    %100 = vmatprep.subr.bf16.mxu0 0
    %101 = vmatpush1.bf16.msra.mxu0 0
    %102 = vmatprep.subr.bf16.mxu0 0
    %103 = vmatpush1.bf16.msra.mxu0 0
    %104 = vmatprep.subr.bf16.mxu0 0
    %105 = vmatpush1.bf16.msra.mxu0 0
    %106 = vmatprep.mubr.bf16.mxu0 0
    %107 = vmatmul.mubr.bf16.gmra.mrb[0].mxu0 %v72
    %v108 = vpop.f32.mrb[0].mxu0
    %v109 = vadd.f32 %v62, %v108
    %v110 = vpop.f32.mrb[0].mxu0
    %v111 = vpop.f32.mrb[0].mxu0
    %v112 = vpop.f32.mrb[0].mxu0
    %113 = vdwg.mxu0
    %v114 = vpack.c.bf16 %v46, %v46
    %v115 = vld [vmem:[%s4] sm:$0xf]
    %v116 = vld [vmem:[%s4 + $0x4] sm:$0xf]
    %v117 = vld [vmem:[%s4 + $0x8] sm:$0xf]
    %v118 = vld [vmem:[%s4 + $0xc] sm:$0xf]
    %v119 = vld [vmem:[%s6] sm:$0x1]
    %v121 = vlaneseq
    %v122 = vshrl.u32 %v121, 7
    %v123 = vsub.s32 0, %v122
    %v124 = vrot.slane %v119, %v123
    %v130 = vunpack.c.l.b16 %v115
    %v131 = vunpack.c.l.b16 %v116
    %v132 = vunpack.c.l.b16 %v117
    %v133 = vunpack.c.l.b16 %v118
    %v134 = vpack.c.b16 %v131, %v130
    %v135 = vpack.c.b16 %v133, %v132
    %vm138 = vcmask 261120
    %v140 = vsel %vm138, %v114, 0
    %142 = vmatprep.subr.bf16.mxu0 0
    %143 = vmatpush1.bf16.msra.mxu0 %v134
    %144 = vmatprep.subr.bf16.mxu0 0
    %145 = vmatpush1.bf16.msra.mxu0 %v135
    %146 = vmatprep.subr.bf16.mxu0 0
    %147 = vmatpush1.bf16.msra.mxu0 0
    %148 = vmatprep.subr.bf16.mxu0 0
    %149 = vmatpush1.bf16.msra.mxu0 0
    %150 = vmatprep.subr.bf16.mxu0 0
    %151 = vmatpush1.bf16.msra.mxu0 0
    %152 = vmatprep.subr.bf16.mxu0 0
    %153 = vmatpush1.bf16.msra.mxu0 0
    %154 = vmatprep.subr.bf16.mxu0 0
    %155 = vmatpush1.bf16.msra.mxu0 0
    %156 = vmatprep.subr.bf16.mxu0 0
    %157 = vmatpush1.bf16.msra.mxu0 0
    %158 = vmatprep.subr.bf16.mxu0 0
    %159 = vmatpush1.bf16.msra.mxu0 0
    %160 = vmatprep.subr.bf16.mxu0 0
    %161 = vmatpush1.bf16.msra.mxu0 0
    %162 = vmatprep.subr.bf16.mxu0 0
    %163 = vmatpush1.bf16.msra.mxu0 0
    %164 = vmatprep.subr.bf16.mxu0 0
    %165 = vmatpush1.bf16.msra.mxu0 0
    %166 = vmatprep.subr.bf16.mxu0 0
    %167 = vmatpush1.bf16.msra.mxu0 0
    %168 = vmatprep.subr.bf16.mxu0 0
    %169 = vmatpush1.bf16.msra.mxu0 0
    %170 = vmatprep.subr.bf16.mxu0 0
    %171 = vmatpush1.bf16.msra.mxu0 0
    %172 = vmatprep.subr.bf16.mxu0 0
    %173 = vmatpush1.bf16.msra.mxu0 0
    %174 = vmatprep.mubr.bf16.mxu0 0
    %175 = vmatmul.mubr.bf16.gmra.mrb[0].mxu0 %v140
    %v176 = vpop.f32.mrb[0].mxu0
    %v177 = vadd.f32 %v124, %v176
    %v178 = vpop.f32.mrb[0].mxu0
    %v179 = vpop.f32.mrb[0].mxu0
    %v180 = vpop.f32.mrb[0].mxu0
    %181 = vdwg.mxu0
    %v182 = vadd.f32 %v109, %v177
    %v183 = vxor.u32 %v182, 2147483648
    %v184 = vmul.f32 %v183, 1.442695
    %v185 = vpow.pop %v184
    %v186 = vadd.f32 %v185, 1.0
    %v187 = vrcp.pop %v186
    %v188 = vmul.f32 1.0, %v187
    %190 = vrot.lane.b32.xlu0 %v177, 64
    %v191 = vpop.permute.xlu0 %190
    %v193 = vmul.f32 %v188, %v191
    %195 = vrot.lane.b32.xlu0 %v193, 64
    %v196 = vpop.permute.xlu0 %195
    %v198 = vadd.f32 %v109, %v196
    %v199 = vtanh.pop %v198
    %v200 = vsub.f32 1.0, %v188
    %202 = vrot.lane.b32.xlu0 %v199, 96
    %v203 = vpop.permute.xlu0 %202
    %v205 = vmul.f32 %v200, %v203
    %207 = vrot.lane.b32.xlu0 %v46, 32
    %v208 = vpop.permute.xlu0 %207
    %v210 = vmul.f32 %v188, %v208
    %v211 = vadd.f32 %v205, %v210
    %v213 = vcombine.high %v211, %v211
    %v215 = vunpack.c.l.s4 1966171168
    %v216 = vunpack.c.0.s8 %v215
    %v217 = vlaneseq
    %v218 = vshrl.u32 %v217, 7
    %v219 = vsub.s32 %v216, %v218
    %v220 = vrot.slane %v211, %v219
    %v222 = vunpack.c.l.s4 1966171168
    %v223 = vunpack.c.0.s8 %v222
    %v224 = vlaneseq
    %v225 = vshrl.u32 %v224, 7
    %v226 = vsub.s32 %v223, %v225
    %v227 = vrot.slane %v213, %v226
    %v228 = vcombine.high %v220, %v220
    %v229 = vcombine.high %v227, %v227
    %v231 = vunpack.c.l.s4 1966171168
    %v232 = vunpack.c.0.s8 %v231
    %v233 = vlaneseq
    %v234 = vshrl.u32 %v233, 7
    %v235 = vsub.s32 %v232, %v234
    %v236 = vrot.slane %v220, %v235
    %v238 = vunpack.c.l.s4 1966171168
    %v239 = vunpack.c.0.s8 %v238
    %v240 = vlaneseq
    %v241 = vshrl.u32 %v240, 7
    %v242 = vsub.s32 %v239, %v241
    %v243 = vrot.slane %v227, %v242
    %v245 = vunpack.c.l.s4 1966171168
    %v246 = vunpack.c.0.s8 %v245
    %v247 = vlaneseq
    %v248 = vshrl.u32 %v247, 7
    %v249 = vsub.s32 %v246, %v248
    %v250 = vrot.slane %v228, %v249
    %v252 = vunpack.c.l.s4 1966171168
    %v253 = vunpack.c.0.s8 %v252
    %v254 = vlaneseq
    %v255 = vshrl.u32 %v254, 7
    %v256 = vsub.s32 %v253, %v255
    %v257 = vrot.slane %v229, %v256
    %v258 = vcombine.high %v236, %v236
    %v259 = vcombine.high %v243, %v243
    %v260 = vcombine.high %v250, %v250
    %v261 = vcombine.high %v257, %v257
    %v270 = vpack.c.bf16 %v236, %v236
    %v271 = vpack.c.bf16 %v250, %v250
    %v272 = vpack.c.bf16 %v258, %v258
    %v273 = vpack.c.bf16 %v260, %v260
    %v274 = vpack.c.bf16 %v243, %v243
    %v275 = vpack.c.bf16 %v257, %v257
    %v276 = vpack.c.bf16 %v259, %v259
    %v277 = vpack.c.bf16 %v261, %v261
    %279 = vrot.lane.b32.xlu0 %v270, 96
    %v280 = vpop.permute.xlu0 %279
    %v282 = vsel %vm138, %v280, 0
    %v285 = vsel %vm138, %v47, 0
    %287 = vmatprep.subr.bf16.mxu0 0
    %288 = vmatpush1.bf16.xpose.msra.mxu0 %v285
    %289 = vmatprep.subr.bf16.mxu0 0
    %290 = vmatpush1.bf16.xpose.msra.mxu0 0
    %291 = vmatprep.subr.bf16.mxu0 0
    %292 = vmatpush1.bf16.xpose.msra.mxu0 0
    %293 = vmatprep.subr.bf16.mxu0 0
    %294 = vmatpush1.bf16.xpose.msra.mxu0 0
    %295 = vmatprep.subr.bf16.mxu0 0
    %296 = vmatpush1.bf16.xpose.msra.mxu0 0
    %297 = vmatprep.subr.bf16.mxu0 0
    %298 = vmatpush1.bf16.xpose.msra.mxu0 0
    %299 = vmatprep.subr.bf16.mxu0 0
    %300 = vmatpush1.bf16.xpose.msra.mxu0 0
    %301 = vmatprep.subr.bf16.mxu0 0
    %302 = vmatpush1.bf16.xpose.msra.mxu0 0
    %303 = vmatprep.subr.bf16.mxu0 0
    %304 = vmatpush1.bf16.xpose.msra.mxu0 0
    %305 = vmatprep.subr.bf16.mxu0 0
    %306 = vmatpush1.bf16.xpose.msra.mxu0 0
    %307 = vmatprep.subr.bf16.mxu0 0
    %308 = vmatpush1.bf16.xpose.msra.mxu0 0
    %309 = vmatprep.subr.bf16.mxu0 0
    %310 = vmatpush1.bf16.xpose.msra.mxu0 0
    %311 = vmatprep.subr.bf16.mxu0 0
    %312 = vmatpush1.bf16.xpose.msra.mxu0 0
    %313 = vmatprep.subr.bf16.mxu0 0
    %314 = vmatpush1.bf16.xpose.msra.mxu0 0
    %315 = vmatprep.subr.bf16.mxu0 0
    %316 = vmatpush1.bf16.xpose.msra.mxu0 0
    %317 = vmatprep.subr.bf16.mxu0 0
    %318 = vmatpush1.bf16.xpose.msra.mxu0 0
    %319 = vmatprep.mubr.bf16.mxu0 0
    %320 = vmatmul.mubr.bf16.gmra.mrb[0].mxu0 %v282
    %v321 = vpop.f32.mrb[0].mxu0
    %v322 = vadd.f32 0.0, %v321
    %v323 = vpop.f32.mrb[0].mxu0
    %v324 = vpop.f32.mrb[0].mxu0
    %v325 = vpop.f32.mrb[0].mxu0
    %326 = vdwg.mxu0
    %328 = vrot.lane.b32.xlu0 %v271, 96
    %v329 = vpop.permute.xlu0 %328
    %v331 = vsel %vm138, %v329, 0
    %v334 = vsel %vm138, %v48, 0
    %336 = vmatprep.subr.bf16.mxu0 0
    %337 = vmatpush1.bf16.xpose.msra.mxu0 %v334
    %338 = vmatprep.subr.bf16.mxu0 0
    %339 = vmatpush1.bf16.xpose.msra.mxu0 0
    %340 = vmatprep.subr.bf16.mxu0 0
    %341 = vmatpush1.bf16.xpose.msra.mxu0 0
    %342 = vmatprep.subr.bf16.mxu0 0
    %343 = vmatpush1.bf16.xpose.msra.mxu0 0
    %344 = vmatprep.subr.bf16.mxu0 0
    %345 = vmatpush1.bf16.xpose.msra.mxu0 0
    %346 = vmatprep.subr.bf16.mxu0 0
    %347 = vmatpush1.bf16.xpose.msra.mxu0 0
    %348 = vmatprep.subr.bf16.mxu0 0
    %349 = vmatpush1.bf16.xpose.msra.mxu0 0
    %350 = vmatprep.subr.bf16.mxu0 0
    %351 = vmatpush1.bf16.xpose.msra.mxu0 0
    %352 = vmatprep.subr.bf16.mxu0 0
    %353 = vmatpush1.bf16.xpose.msra.mxu0 0
    %354 = vmatprep.subr.bf16.mxu0 0
    %355 = vmatpush1.bf16.xpose.msra.mxu0 0
    %356 = vmatprep.subr.bf16.mxu0 0
    %357 = vmatpush1.bf16.xpose.msra.mxu0 0
    %358 = vmatprep.subr.bf16.mxu0 0
    %359 = vmatpush1.bf16.xpose.msra.mxu0 0
    %360 = vmatprep.subr.bf16.mxu0 0
    %361 = vmatpush1.bf16.xpose.msra.mxu0 0
    %362 = vmatprep.subr.bf16.mxu0 0
    %363 = vmatpush1.bf16.xpose.msra.mxu0 0
    %364 = vmatprep.subr.bf16.mxu0 0
    %365 = vmatpush1.bf16.xpose.msra.mxu0 0
    %366 = vmatprep.subr.bf16.mxu0 0
    %367 = vmatpush1.bf16.xpose.msra.mxu0 0
    %368 = vmatprep.mubr.bf16.mxu0 0
    %369 = vmatmul.mubr.bf16.gmra.mrb[0].mxu0 %v331
    %v370 = vpop.f32.mrb[0].mxu0
    %v371 = vadd.f32 0.0, %v370
    %v372 = vpop.f32.mrb[0].mxu0
    %v373 = vpop.f32.mrb[0].mxu0
    %v374 = vpop.f32.mrb[0].mxu0
    %375 = vdwg.mxu0
    %377 = vrot.lane.b32.xlu0 %v272, 96
    %v378 = vpop.permute.xlu0 %377
    %v380 = vsel %vm138, %v378, 0
    %v383 = vsel %vm138, %v49, 0
    %385 = vmatprep.subr.bf16.mxu0 0
    %386 = vmatpush1.bf16.xpose.msra.mxu0 %v383
    %387 = vmatprep.subr.bf16.mxu0 0
    %388 = vmatpush1.bf16.xpose.msra.mxu0 0
    %389 = vmatprep.subr.bf16.mxu0 0
    %390 = vmatpush1.bf16.xpose.msra.mxu0 0
    %391 = vmatprep.subr.bf16.mxu0 0
    %392 = vmatpush1.bf16.xpose.msra.mxu0 0
    %393 = vmatprep.subr.bf16.mxu0 0
    %394 = vmatpush1.bf16.xpose.msra.mxu0 0
    %395 = vmatprep.subr.bf16.mxu0 0
    %396 = vmatpush1.bf16.xpose.msra.mxu0 0
    %397 = vmatprep.subr.bf16.mxu0 0
    %398 = vmatpush1.bf16.xpose.msra.mxu0 0
    %399 = vmatprep.subr.bf16.mxu0 0
    %400 = vmatpush1.bf16.xpose.msra.mxu0 0
    %401 = vmatprep.subr.bf16.mxu0 0
    %402 = vmatpush1.bf16.xpose.msra.mxu0 0
    %403 = vmatprep.subr.bf16.mxu0 0
    %404 = vmatpush1.bf16.xpose.msra.mxu0 0
    %405 = vmatprep.subr.bf16.mxu0 0
    %406 = vmatpush1.bf16.xpose.msra.mxu0 0
    %407 = vmatprep.subr.bf16.mxu0 0
    %408 = vmatpush1.bf16.xpose.msra.mxu0 0
    %409 = vmatprep.subr.bf16.mxu0 0
    %410 = vmatpush1.bf16.xpose.msra.mxu0 0
    %411 = vmatprep.subr.bf16.mxu0 0
    %412 = vmatpush1.bf16.xpose.msra.mxu0 0
    %413 = vmatprep.subr.bf16.mxu0 0
    %414 = vmatpush1.bf16.xpose.msra.mxu0 0
    %415 = vmatprep.subr.bf16.mxu0 0
    %416 = vmatpush1.bf16.xpose.msra.mxu0 0
    %417 = vmatprep.mubr.bf16.mxu0 0
    %418 = vmatmul.mubr.bf16.gmra.mrb[0].mxu0 %v380
    %v419 = vpop.f32.mrb[0].mxu0
    %v420 = vadd.f32 0.0, %v419
    %v421 = vpop.f32.mrb[0].mxu0
    %v422 = vpop.f32.mrb[0].mxu0
    %v423 = vpop.f32.mrb[0].mxu0
    %424 = vdwg.mxu0
    %426 = vrot.lane.b32.xlu0 %v273, 96
    %v427 = vpop.permute.xlu0 %426
    %v429 = vsel %vm138, %v427, 0
    %v432 = vsel %vm138, %v50, 0
    %434 = vmatprep.subr.bf16.mxu0 0
    %435 = vmatpush1.bf16.xpose.msra.mxu0 %v432
    %436 = vmatprep.subr.bf16.mxu0 0
    %437 = vmatpush1.bf16.xpose.msra.mxu0 0
    %438 = vmatprep.subr.bf16.mxu0 0
    %439 = vmatpush1.bf16.xpose.msra.mxu0 0
    %440 = vmatprep.subr.bf16.mxu0 0
    %441 = vmatpush1.bf16.xpose.msra.mxu0 0
    %442 = vmatprep.subr.bf16.mxu0 0
    %443 = vmatpush1.bf16.xpose.msra.mxu0 0
    %444 = vmatprep.subr.bf16.mxu0 0
    %445 = vmatpush1.bf16.xpose.msra.mxu0 0
    %446 = vmatprep.subr.bf16.mxu0 0
    %447 = vmatpush1.bf16.xpose.msra.mxu0 0
    %448 = vmatprep.subr.bf16.mxu0 0
    %449 = vmatpush1.bf16.xpose.msra.mxu0 0
    %450 = vmatprep.subr.bf16.mxu0 0
    %451 = vmatpush1.bf16.xpose.msra.mxu0 0
    %452 = vmatprep.subr.bf16.mxu0 0
    %453 = vmatpush1.bf16.xpose.msra.mxu0 0
    %454 = vmatprep.subr.bf16.mxu0 0
    %455 = vmatpush1.bf16.xpose.msra.mxu0 0
    %456 = vmatprep.subr.bf16.mxu0 0
    %457 = vmatpush1.bf16.xpose.msra.mxu0 0
    %458 = vmatprep.subr.bf16.mxu0 0
    %459 = vmatpush1.bf16.xpose.msra.mxu0 0
    %460 = vmatprep.subr.bf16.mxu0 0
    %461 = vmatpush1.bf16.xpose.msra.mxu0 0
    %462 = vmatprep.subr.bf16.mxu0 0
    %463 = vmatpush1.bf16.xpose.msra.mxu0 0
    %464 = vmatprep.subr.bf16.mxu0 0
    %465 = vmatpush1.bf16.xpose.msra.mxu0 0
    %466 = vmatprep.mubr.bf16.mxu0 0
    %467 = vmatmul.mubr.bf16.gmra.mrb[0].mxu0 %v429
    %v468 = vpop.f32.mrb[0].mxu0
    %v469 = vadd.f32 0.0, %v468
    %v470 = vpop.f32.mrb[0].mxu0
    %v471 = vpop.f32.mrb[0].mxu0
    %v472 = vpop.f32.mrb[0].mxu0
    %473 = vdwg.mxu0
    %475 = vrot.lane.b32.xlu0 %v274, 96
    %v476 = vpop.permute.xlu0 %475
    %v478 = vsel %vm138, %v476, 0
    %v481 = vsel %vm138, %v51, 0
    %483 = vmatprep.subr.bf16.mxu0 0
    %484 = vmatpush1.bf16.xpose.msra.mxu0 %v481
    %485 = vmatprep.subr.bf16.mxu0 0
    %486 = vmatpush1.bf16.xpose.msra.mxu0 0
    %487 = vmatprep.subr.bf16.mxu0 0
    %488 = vmatpush1.bf16.xpose.msra.mxu0 0
    %489 = vmatprep.subr.bf16.mxu0 0
    %490 = vmatpush1.bf16.xpose.msra.mxu0 0
    %491 = vmatprep.subr.bf16.mxu0 0
    %492 = vmatpush1.bf16.xpose.msra.mxu0 0
    %493 = vmatprep.subr.bf16.mxu0 0
    %494 = vmatpush1.bf16.xpose.msra.mxu0 0
    %495 = vmatprep.subr.bf16.mxu0 0
    %496 = vmatpush1.bf16.xpose.msra.mxu0 0
    %497 = vmatprep.subr.bf16.mxu0 0
    %498 = vmatpush1.bf16.xpose.msra.mxu0 0
    %499 = vmatprep.subr.bf16.mxu0 0
    %500 = vmatpush1.bf16.xpose.msra.mxu0 0
    %501 = vmatprep.subr.bf16.mxu0 0
    %502 = vmatpush1.bf16.xpose.msra.mxu0 0
    %503 = vmatprep.subr.bf16.mxu0 0
    %504 = vmatpush1.bf16.xpose.msra.mxu0 0
    %505 = vmatprep.subr.bf16.mxu0 0
    %506 = vmatpush1.bf16.xpose.msra.mxu0 0
    %507 = vmatprep.subr.bf16.mxu0 0
    %508 = vmatpush1.bf16.xpose.msra.mxu0 0
    %509 = vmatprep.subr.bf16.mxu0 0
    %510 = vmatpush1.bf16.xpose.msra.mxu0 0
    %511 = vmatprep.subr.bf16.mxu0 0
    %512 = vmatpush1.bf16.xpose.msra.mxu0 0
    %513 = vmatprep.subr.bf16.mxu0 0
    %514 = vmatpush1.bf16.xpose.msra.mxu0 0
    %515 = vmatprep.mubr.bf16.mxu0 0
    %516 = vmatmul.mubr.bf16.gmra.mrb[0].mxu0 %v478
    %v517 = vpop.f32.mrb[0].mxu0
    %v518 = vadd.f32 0.0, %v517
    %v519 = vpop.f32.mrb[0].mxu0
    %v520 = vpop.f32.mrb[0].mxu0
    %v521 = vpop.f32.mrb[0].mxu0
    %522 = vdwg.mxu0
    %524 = vrot.lane.b32.xlu0 %v275, 96
    %v525 = vpop.permute.xlu0 %524
    %v527 = vsel %vm138, %v525, 0
    %v530 = vsel %vm138, %v52, 0
    %532 = vmatprep.subr.bf16.mxu0 0
    %533 = vmatpush1.bf16.xpose.msra.mxu0 %v530
    %534 = vmatprep.subr.bf16.mxu0 0
    %535 = vmatpush1.bf16.xpose.msra.mxu0 0
    %536 = vmatprep.subr.bf16.mxu0 0
    %537 = vmatpush1.bf16.xpose.msra.mxu0 0
    %538 = vmatprep.subr.bf16.mxu0 0
    %539 = vmatpush1.bf16.xpose.msra.mxu0 0
    %540 = vmatprep.subr.bf16.mxu0 0
    %541 = vmatpush1.bf16.xpose.msra.mxu0 0
    %542 = vmatprep.subr.bf16.mxu0 0
    %543 = vmatpush1.bf16.xpose.msra.mxu0 0
    %544 = vmatprep.subr.bf16.mxu0 0
    %545 = vmatpush1.bf16.xpose.msra.mxu0 0
    %546 = vmatprep.subr.bf16.mxu0 0
    %547 = vmatpush1.bf16.xpose.msra.mxu0 0
    %548 = vmatprep.subr.bf16.mxu0 0
    %549 = vmatpush1.bf16.xpose.msra.mxu0 0
    %550 = vmatprep.subr.bf16.mxu0 0
    %551 = vmatpush1.bf16.xpose.msra.mxu0 0
    %552 = vmatprep.subr.bf16.mxu0 0
    %553 = vmatpush1.bf16.xpose.msra.mxu0 0
    %554 = vmatprep.subr.bf16.mxu0 0
    %555 = vmatpush1.bf16.xpose.msra.mxu0 0
    %556 = vmatprep.subr.bf16.mxu0 0
    %557 = vmatpush1.bf16.xpose.msra.mxu0 0
    %558 = vmatprep.subr.bf16.mxu0 0
    %559 = vmatpush1.bf16.xpose.msra.mxu0 0
    %560 = vmatprep.subr.bf16.mxu0 0
    %561 = vmatpush1.bf16.xpose.msra.mxu0 0
    %562 = vmatprep.subr.bf16.mxu0 0
    %563 = vmatpush1.bf16.xpose.msra.mxu0 0
    %564 = vmatprep.mubr.bf16.mxu0 0
    %565 = vmatmul.mubr.bf16.gmra.mrb[0].mxu0 %v527
    %v566 = vpop.f32.mrb[0].mxu0
    %v567 = vadd.f32 0.0, %v566
    %v568 = vpop.f32.mrb[0].mxu0
    %v569 = vpop.f32.mrb[0].mxu0
    %v570 = vpop.f32.mrb[0].mxu0
    %571 = vdwg.mxu0
    %573 = vrot.lane.b32.xlu0 %v276, 96
    %v574 = vpop.permute.xlu0 %573
    %v576 = vsel %vm138, %v574, 0
    %v579 = vsel %vm138, %v53, 0
    %581 = vmatprep.subr.bf16.mxu0 0
    %582 = vmatpush1.bf16.xpose.msra.mxu0 %v579
    %583 = vmatprep.subr.bf16.mxu0 0
    %584 = vmatpush1.bf16.xpose.msra.mxu0 0
    %585 = vmatprep.subr.bf16.mxu0 0
    %586 = vmatpush1.bf16.xpose.msra.mxu0 0
    %587 = vmatprep.subr.bf16.mxu0 0
    %588 = vmatpush1.bf16.xpose.msra.mxu0 0
    %589 = vmatprep.subr.bf16.mxu0 0
    %590 = vmatpush1.bf16.xpose.msra.mxu0 0
    %591 = vmatprep.subr.bf16.mxu0 0
    %592 = vmatpush1.bf16.xpose.msra.mxu0 0
    %593 = vmatprep.subr.bf16.mxu0 0
    %594 = vmatpush1.bf16.xpose.msra.mxu0 0
    %595 = vmatprep.subr.bf16.mxu0 0
    %596 = vmatpush1.bf16.xpose.msra.mxu0 0
    %597 = vmatprep.subr.bf16.mxu0 0
    %598 = vmatpush1.bf16.xpose.msra.mxu0 0
    %599 = vmatprep.subr.bf16.mxu0 0
    %600 = vmatpush1.bf16.xpose.msra.mxu0 0
    %601 = vmatprep.subr.bf16.mxu0 0
    %602 = vmatpush1.bf16.xpose.msra.mxu0 0
    %603 = vmatprep.subr.bf16.mxu0 0
    %604 = vmatpush1.bf16.xpose.msra.mxu0 0
    %605 = vmatprep.subr.bf16.mxu0 0
    %606 = vmatpush1.bf16.xpose.msra.mxu0 0
    %607 = vmatprep.subr.bf16.mxu0 0
    %608 = vmatpush1.bf16.xpose.msra.mxu0 0
    %609 = vmatprep.subr.bf16.mxu0 0
    %610 = vmatpush1.bf16.xpose.msra.mxu0 0
    %611 = vmatprep.subr.bf16.mxu0 0
    %612 = vmatpush1.bf16.xpose.msra.mxu0 0
    %613 = vmatprep.mubr.bf16.mxu0 0
    %614 = vmatmul.mubr.bf16.gmra.mrb[0].mxu0 %v576
    %v615 = vpop.f32.mrb[0].mxu0
    %v616 = vadd.f32 0.0, %v615
    %v617 = vpop.f32.mrb[0].mxu0
    %v618 = vpop.f32.mrb[0].mxu0
    %v619 = vpop.f32.mrb[0].mxu0
    %620 = vdwg.mxu0
    %622 = vrot.lane.b32.xlu0 %v277, 96
    %v623 = vpop.permute.xlu0 %622
    %v625 = vsel %vm138, %v623, 0
    %v628 = vsel %vm138, %v54, 0
    %630 = vmatprep.subr.bf16.mxu0 0
    %631 = vmatpush1.bf16.xpose.msra.mxu0 %v628
    %632 = vmatprep.subr.bf16.mxu0 0
    %633 = vmatpush1.bf16.xpose.msra.mxu0 0
    %634 = vmatprep.subr.bf16.mxu0 0
    %635 = vmatpush1.bf16.xpose.msra.mxu0 0
    %636 = vmatprep.subr.bf16.mxu0 0
    %637 = vmatpush1.bf16.xpose.msra.mxu0 0
    %638 = vmatprep.subr.bf16.mxu0 0
    %639 = vmatpush1.bf16.xpose.msra.mxu0 0
    %640 = vmatprep.subr.bf16.mxu0 0
    %641 = vmatpush1.bf16.xpose.msra.mxu0 0
    %642 = vmatprep.subr.bf16.mxu0 0
    %643 = vmatpush1.bf16.xpose.msra.mxu0 0
    %644 = vmatprep.subr.bf16.mxu0 0
    %645 = vmatpush1.bf16.xpose.msra.mxu0 0
    %646 = vmatprep.subr.bf16.mxu0 0
    %647 = vmatpush1.bf16.xpose.msra.mxu0 0
    %648 = vmatprep.subr.bf16.mxu0 0
    %649 = vmatpush1.bf16.xpose.msra.mxu0 0
    %650 = vmatprep.subr.bf16.mxu0 0
    %651 = vmatpush1.bf16.xpose.msra.mxu0 0
    %652 = vmatprep.subr.bf16.mxu0 0
    %653 = vmatpush1.bf16.xpose.msra.mxu0 0
    %654 = vmatprep.subr.bf16.mxu0 0
    %655 = vmatpush1.bf16.xpose.msra.mxu0 0
    %656 = vmatprep.subr.bf16.mxu0 0
    %657 = vmatpush1.bf16.xpose.msra.mxu0 0
    %658 = vmatprep.subr.bf16.mxu0 0
    %659 = vmatpush1.bf16.xpose.msra.mxu0 0
    %660 = vmatprep.subr.bf16.mxu0 0
    %661 = vmatpush1.bf16.xpose.msra.mxu0 0
    %662 = vmatprep.mubr.bf16.mxu0 0
    %663 = vmatmul.mubr.bf16.gmra.mrb[0].mxu0 %v625
    %v664 = vpop.f32.mrb[0].mxu0
    %v665 = vadd.f32 0.0, %v664
    %v666 = vpop.f32.mrb[0].mxu0
    %v667 = vpop.f32.mrb[0].mxu0
    %v668 = vpop.f32.mrb[0].mxu0
    %669 = vdwg.mxu0
    %vm670 = vcmask 57344
    %v671 = vsel %vm670, %v322, -inf
    %672 = vmax.xlane.f32.xlu0 %v671
    %v673 = vpop.xlane.xlu0 %672
    %v674 = vsel %vm670, %v371, -inf
    %675 = vmax.xlane.f32.xlu0 %v674
    %v676 = vpop.xlane.xlu0 %675
    %v677 = vsel %vm670, %v420, -inf
    %678 = vmax.xlane.f32.xlu0 %v677
    %v679 = vpop.xlane.xlu0 %678
    %v680 = vsel %vm670, %v469, -inf
    %681 = vmax.xlane.f32.xlu0 %v680
    %v682 = vpop.xlane.xlu0 %681
    %v683 = vsel %vm670, %v518, -inf
    %684 = vmax.xlane.f32.xlu0 %v683
    %v685 = vpop.xlane.xlu0 %684
    %v686 = vsel %vm670, %v567, -inf
    %687 = vmax.xlane.f32.xlu0 %v686
    %v688 = vpop.xlane.xlu0 %687
    %v689 = vsel %vm670, %v616, -inf
    %690 = vmax.xlane.f32.xlu0 %v689
    %v691 = vpop.xlane.xlu0 %690
    %v692 = vsel %vm670, %v665, -inf
    %693 = vmax.xlane.f32.xlu0 %v692
    %v694 = vpop.xlane.xlu0 %693
    %v695 = vsub.f32 %v322, %v673
    %v696 = vsub.f32 %v371, %v676
    %v697 = vsub.f32 %v420, %v679
    %v698 = vsub.f32 %v469, %v682
    %v699 = vsub.f32 %v518, %v685
    %v700 = vsub.f32 %v567, %v688
    %v701 = vsub.f32 %v616, %v691
    %v702 = vsub.f32 %v665, %v694
    %v703 = vmul.f32 %v695, 1.442695
    %v704 = vpow.pop %v703
    %v705 = vmul.f32 %v696, 1.442695
    %v706 = vpow.pop %v705
    %v707 = vmul.f32 %v697, 1.442695
    %v708 = vpow.pop %v707
    %v709 = vmul.f32 %v698, 1.442695
    %v710 = vpow.pop %v709
    %v711 = vmul.f32 %v699, 1.442695
    %v712 = vpow.pop %v711
    %v713 = vmul.f32 %v700, 1.442695
    %v714 = vpow.pop %v713
    %v715 = vmul.f32 %v701, 1.442695
    %v716 = vpow.pop %v715
    %v717 = vmul.f32 %v702, 1.442695
    %v718 = vpow.pop %v717
    %v719 = vsel %vm670, %v704, 0.0
    %720 = vadd.xlane.f32.xlu0 %v719
    %v721 = vpop.xlane.xlu0 %720
    %v722 = vsel %vm670, %v706, 0.0
    %723 = vadd.xlane.f32.xlu0 %v722
    %v724 = vpop.xlane.xlu0 %723
    %v725 = vsel %vm670, %v708, 0.0
    %726 = vadd.xlane.f32.xlu0 %v725
    %v727 = vpop.xlane.xlu0 %726
    %v728 = vsel %vm670, %v710, 0.0
    %729 = vadd.xlane.f32.xlu0 %v728
    %v730 = vpop.xlane.xlu0 %729
    %v731 = vsel %vm670, %v712, 0.0
    %732 = vadd.xlane.f32.xlu0 %v731
    %v733 = vpop.xlane.xlu0 %732
    %v734 = vsel %vm670, %v714, 0.0
    %735 = vadd.xlane.f32.xlu0 %v734
    %v736 = vpop.xlane.xlu0 %735
    %v737 = vsel %vm670, %v716, 0.0
    %738 = vadd.xlane.f32.xlu0 %v737
    %v739 = vpop.xlane.xlu0 %738
    %v740 = vsel %vm670, %v718, 0.0
    %741 = vadd.xlane.f32.xlu0 %v740
    %v742 = vpop.xlane.xlu0 %741
    %v743 = vrcp.pop %v721
    %v744 = vrcp.pop %v724
    %v745 = vrcp.pop %v727
    %v746 = vrcp.pop %v730
    %v747 = vrcp.pop %v733
    %v748 = vrcp.pop %v736
    %v749 = vrcp.pop %v739
    %v750 = vrcp.pop %v742
    %v751 = vmul.f32 %v704, %v743
    %v752 = vmul.f32 %v706, %v744
    %v753 = vmul.f32 %v708, %v745
    %v754 = vmul.f32 %v710, %v746
    %v755 = vmul.f32 %v712, %v747
    %v756 = vmul.f32 %v714, %v748
    %v757 = vmul.f32 %v716, %v749
    %v758 = vmul.f32 %v718, %v750
    %v759 = vpack.c.bf16 %v751, %v751
    %v760 = vpack.c.bf16 %v752, %v752
    %v761 = vpack.c.bf16 %v753, %v753
    %v762 = vpack.c.bf16 %v754, %v754
    %v763 = vpack.c.bf16 %v755, %v755
    %v764 = vpack.c.bf16 %v756, %v756
    %v765 = vpack.c.bf16 %v757, %v757
    %v766 = vpack.c.bf16 %v758, %v758
    %vm767 = vcmask 64512
    %v769 = vsel %vm767, %v759, 0
    %vm771 = vcmask 1043456
    %v772 = vsel %vm771, %v47, 0
    %774 = vmatprep.subr.bf16.mxu0 0
    %775 = vmatpush1.bf16.msra.mxu0 %v772
    %776 = vmatprep.subr.bf16.mxu0 0
    %777 = vmatpush1.bf16.msra.mxu0 0
    %778 = vmatprep.subr.bf16.mxu0 0
    %779 = vmatpush1.bf16.msra.mxu0 0
    %780 = vmatprep.subr.bf16.mxu0 0
    %781 = vmatpush1.bf16.msra.mxu0 0
    %782 = vmatprep.subr.bf16.mxu0 0
    %783 = vmatpush1.bf16.msra.mxu0 0
    %784 = vmatprep.subr.bf16.mxu0 0
    %785 = vmatpush1.bf16.msra.mxu0 0
    %786 = vmatprep.subr.bf16.mxu0 0
    %787 = vmatpush1.bf16.msra.mxu0 0
    %788 = vmatprep.subr.bf16.mxu0 0
    %789 = vmatpush1.bf16.msra.mxu0 0
    %790 = vmatprep.subr.bf16.mxu0 0
    %791 = vmatpush1.bf16.msra.mxu0 0
    %792 = vmatprep.subr.bf16.mxu0 0
    %793 = vmatpush1.bf16.msra.mxu0 0
    %794 = vmatprep.subr.bf16.mxu0 0
    %795 = vmatpush1.bf16.msra.mxu0 0
    %796 = vmatprep.subr.bf16.mxu0 0
    %797 = vmatpush1.bf16.msra.mxu0 0
    %798 = vmatprep.subr.bf16.mxu0 0
    %799 = vmatpush1.bf16.msra.mxu0 0
    %800 = vmatprep.subr.bf16.mxu0 0
    %801 = vmatpush1.bf16.msra.mxu0 0
    %802 = vmatprep.subr.bf16.mxu0 0
    %803 = vmatpush1.bf16.msra.mxu0 0
    %804 = vmatprep.subr.bf16.mxu0 0
    %805 = vmatpush1.bf16.msra.mxu0 0
    %806 = vmatprep.mubr.bf16.mxu0 0
    %807 = vmatmul.mubr.bf16.gmra.mrb[0].mxu0 %v769
    %v808 = vpop.f32.mrb[0].mxu0
    %v809 = vadd.f32 0.0, %v808
    %v810 = vpop.f32.mrb[0].mxu0
    %v811 = vpop.f32.mrb[0].mxu0
    %v812 = vpop.f32.mrb[0].mxu0
    %813 = vdwg.mxu0
    %v815 = vsel %vm767, %v760, 0
    %v817 = vsel %vm771, %v48, 0
    %819 = vmatprep.subr.bf16.mxu0 0
    %820 = vmatpush1.bf16.msra.mxu0 %v817
    %821 = vmatprep.subr.bf16.mxu0 0
    %822 = vmatpush1.bf16.msra.mxu0 0
    %823 = vmatprep.subr.bf16.mxu0 0
    %824 = vmatpush1.bf16.msra.mxu0 0
    %825 = vmatprep.subr.bf16.mxu0 0
    %826 = vmatpush1.bf16.msra.mxu0 0
    %827 = vmatprep.subr.bf16.mxu0 0
    %828 = vmatpush1.bf16.msra.mxu0 0
    %829 = vmatprep.subr.bf16.mxu0 0
    %830 = vmatpush1.bf16.msra.mxu0 0
    %831 = vmatprep.subr.bf16.mxu0 0
    %832 = vmatpush1.bf16.msra.mxu0 0
    %833 = vmatprep.subr.bf16.mxu0 0
    %834 = vmatpush1.bf16.msra.mxu0 0
    %835 = vmatprep.subr.bf16.mxu0 0
    %836 = vmatpush1.bf16.msra.mxu0 0
    %837 = vmatprep.subr.bf16.mxu0 0
    %838 = vmatpush1.bf16.msra.mxu0 0
    %839 = vmatprep.subr.bf16.mxu0 0
    %840 = vmatpush1.bf16.msra.mxu0 0
    %841 = vmatprep.subr.bf16.mxu0 0
    %842 = vmatpush1.bf16.msra.mxu0 0
    %843 = vmatprep.subr.bf16.mxu0 0
    %844 = vmatpush1.bf16.msra.mxu0 0
    %845 = vmatprep.subr.bf16.mxu0 0
    %846 = vmatpush1.bf16.msra.mxu0 0
    %847 = vmatprep.subr.bf16.mxu0 0
    %848 = vmatpush1.bf16.msra.mxu0 0
    %849 = vmatprep.subr.bf16.mxu0 0
    %850 = vmatpush1.bf16.msra.mxu0 0
    %851 = vmatprep.mubr.bf16.mxu0 0
    %852 = vmatmul.mubr.bf16.gmra.mrb[0].mxu0 %v815
    %v853 = vpop.f32.mrb[0].mxu0
    %v854 = vadd.f32 0.0, %v853
    %v855 = vpop.f32.mrb[0].mxu0
    %v856 = vpop.f32.mrb[0].mxu0
    %v857 = vpop.f32.mrb[0].mxu0
    %858 = vdwg.mxu0
    %v860 = vsel %vm767, %v761, 0
    %v862 = vsel %vm771, %v49, 0
    %864 = vmatprep.subr.bf16.mxu0 0
    %865 = vmatpush1.bf16.msra.mxu0 %v862
    %866 = vmatprep.subr.bf16.mxu0 0
    %867 = vmatpush1.bf16.msra.mxu0 0
    %868 = vmatprep.subr.bf16.mxu0 0
    %869 = vmatpush1.bf16.msra.mxu0 0
    %870 = vmatprep.subr.bf16.mxu0 0
    %871 = vmatpush1.bf16.msra.mxu0 0
    %872 = vmatprep.subr.bf16.mxu0 0
    %873 = vmatpush1.bf16.msra.mxu0 0
    %874 = vmatprep.subr.bf16.mxu0 0
    %875 = vmatpush1.bf16.msra.mxu0 0
    %876 = vmatprep.subr.bf16.mxu0 0
    %877 = vmatpush1.bf16.msra.mxu0 0
    %878 = vmatprep.subr.bf16.mxu0 0
    %879 = vmatpush1.bf16.msra.mxu0 0
    %880 = vmatprep.subr.bf16.mxu0 0
    %881 = vmatpush1.bf16.msra.mxu0 0
    %882 = vmatprep.subr.bf16.mxu0 0
    %883 = vmatpush1.bf16.msra.mxu0 0
    %884 = vmatprep.subr.bf16.mxu0 0
    %885 = vmatpush1.bf16.msra.mxu0 0
    %886 = vmatprep.subr.bf16.mxu0 0
    %887 = vmatpush1.bf16.msra.mxu0 0
    %888 = vmatprep.subr.bf16.mxu0 0
    %889 = vmatpush1.bf16.msra.mxu0 0
    %890 = vmatprep.subr.bf16.mxu0 0
    %891 = vmatpush1.bf16.msra.mxu0 0
    %892 = vmatprep.subr.bf16.mxu0 0
    %893 = vmatpush1.bf16.msra.mxu0 0
    %894 = vmatprep.subr.bf16.mxu0 0
    %895 = vmatpush1.bf16.msra.mxu0 0
    %896 = vmatprep.mubr.bf16.mxu0 0
    %897 = vmatmul.mubr.bf16.gmra.mrb[0].mxu0 %v860
    %v898 = vpop.f32.mrb[0].mxu0
    %v899 = vadd.f32 0.0, %v898
    %v900 = vpop.f32.mrb[0].mxu0
    %v901 = vpop.f32.mrb[0].mxu0
    %v902 = vpop.f32.mrb[0].mxu0
    %903 = vdwg.mxu0
    %v905 = vsel %vm767, %v762, 0
    %v907 = vsel %vm771, %v50, 0
    %909 = vmatprep.subr.bf16.mxu0 0
    %910 = vmatpush1.bf16.msra.mxu0 %v907
    %911 = vmatprep.subr.bf16.mxu0 0
    %912 = vmatpush1.bf16.msra.mxu0 0
    %913 = vmatprep.subr.bf16.mxu0 0
    %914 = vmatpush1.bf16.msra.mxu0 0
    %915 = vmatprep.subr.bf16.mxu0 0
    %916 = vmatpush1.bf16.msra.mxu0 0
    %917 = vmatprep.subr.bf16.mxu0 0
    %918 = vmatpush1.bf16.msra.mxu0 0
    %919 = vmatprep.subr.bf16.mxu0 0
    %920 = vmatpush1.bf16.msra.mxu0 0
    %921 = vmatprep.subr.bf16.mxu0 0
    %922 = vmatpush1.bf16.msra.mxu0 0
    %923 = vmatprep.subr.bf16.mxu0 0
    %924 = vmatpush1.bf16.msra.mxu0 0
    %925 = vmatprep.subr.bf16.mxu0 0
    %926 = vmatpush1.bf16.msra.mxu0 0
    %927 = vmatprep.subr.bf16.mxu0 0
    %928 = vmatpush1.bf16.msra.mxu0 0
    %929 = vmatprep.subr.bf16.mxu0 0
    %930 = vmatpush1.bf16.msra.mxu0 0
    %931 = vmatprep.subr.bf16.mxu0 0
    %932 = vmatpush1.bf16.msra.mxu0 0
    %933 = vmatprep.subr.bf16.mxu0 0
    %934 = vmatpush1.bf16.msra.mxu0 0
    %935 = vmatprep.subr.bf16.mxu0 0
    %936 = vmatpush1.bf16.msra.mxu0 0
    %937 = vmatprep.subr.bf16.mxu0 0
    %938 = vmatpush1.bf16.msra.mxu0 0
    %939 = vmatprep.subr.bf16.mxu0 0
    %940 = vmatpush1.bf16.msra.mxu0 0
    %941 = vmatprep.mubr.bf16.mxu0 0
    %942 = vmatmul.mubr.bf16.gmra.mrb[0].mxu0 %v905
    %v943 = vpop.f32.mrb[0].mxu0
    %v944 = vadd.f32 0.0, %v943
    %v945 = vpop.f32.mrb[0].mxu0
    %v946 = vpop.f32.mrb[0].mxu0
    %v947 = vpop.f32.mrb[0].mxu0
    %948 = vdwg.mxu0
    %v950 = vsel %vm767, %v763, 0
    %v952 = vsel %vm771, %v51, 0
    %954 = vmatprep.subr.bf16.mxu0 0
    %955 = vmatpush1.bf16.msra.mxu0 %v952
    %956 = vmatprep.subr.bf16.mxu0 0
    %957 = vmatpush1.bf16.msra.mxu0 0
    %958 = vmatprep.subr.bf16.mxu0 0
    %959 = vmatpush1.bf16.msra.mxu0 0
    %960 = vmatprep.subr.bf16.mxu0 0
    %961 = vmatpush1.bf16.msra.mxu0 0
    %962 = vmatprep.subr.bf16.mxu0 0
    %963 = vmatpush1.bf16.msra.mxu0 0
    %964 = vmatprep.subr.bf16.mxu0 0
    %965 = vmatpush1.bf16.msra.mxu0 0
    %966 = vmatprep.subr.bf16.mxu0 0
    %967 = vmatpush1.bf16.msra.mxu0 0
    %968 = vmatprep.subr.bf16.mxu0 0
    %969 = vmatpush1.bf16.msra.mxu0 0
    %970 = vmatprep.subr.bf16.mxu0 0
    %971 = vmatpush1.bf16.msra.mxu0 0
    %972 = vmatprep.subr.bf16.mxu0 0
    %973 = vmatpush1.bf16.msra.mxu0 0
    %974 = vmatprep.subr.bf16.mxu0 0
    %975 = vmatpush1.bf16.msra.mxu0 0
    %976 = vmatprep.subr.bf16.mxu0 0
    %977 = vmatpush1.bf16.msra.mxu0 0
    %978 = vmatprep.subr.bf16.mxu0 0
    %979 = vmatpush1.bf16.msra.mxu0 0
    %980 = vmatprep.subr.bf16.mxu0 0
    %981 = vmatpush1.bf16.msra.mxu0 0
    %982 = vmatprep.subr.bf16.mxu0 0
    %983 = vmatpush1.bf16.msra.mxu0 0
    %984 = vmatprep.subr.bf16.mxu0 0
    %985 = vmatpush1.bf16.msra.mxu0 0
    %986 = vmatprep.mubr.bf16.mxu0 0
    %987 = vmatmul.mubr.bf16.gmra.mrb[0].mxu0 %v950
    %v988 = vpop.f32.mrb[0].mxu0
    %v989 = vadd.f32 0.0, %v988
    %v990 = vpop.f32.mrb[0].mxu0
    %v991 = vpop.f32.mrb[0].mxu0
    %v992 = vpop.f32.mrb[0].mxu0
    %993 = vdwg.mxu0
    %v995 = vsel %vm767, %v764, 0
    %v997 = vsel %vm771, %v52, 0
    %999 = vmatprep.subr.bf16.mxu0 0
    %1000 = vmatpush1.bf16.msra.mxu0 %v997
    %1001 = vmatprep.subr.bf16.mxu0 0
    %1002 = vmatpush1.bf16.msra.mxu0 0
    %1003 = vmatprep.subr.bf16.mxu0 0
    %1004 = vmatpush1.bf16.msra.mxu0 0
    %1005 = vmatprep.subr.bf16.mxu0 0
    %1006 = vmatpush1.bf16.msra.mxu0 0
    %1007 = vmatprep.subr.bf16.mxu0 0
    %1008 = vmatpush1.bf16.msra.mxu0 0
    %1009 = vmatprep.subr.bf16.mxu0 0
    %1010 = vmatpush1.bf16.msra.mxu0 0
    %1011 = vmatprep.subr.bf16.mxu0 0
    %1012 = vmatpush1.bf16.msra.mxu0 0
    %1013 = vmatprep.subr.bf16.mxu0 0
    %1014 = vmatpush1.bf16.msra.mxu0 0
    %1015 = vmatprep.subr.bf16.mxu0 0
    %1016 = vmatpush1.bf16.msra.mxu0 0
    %1017 = vmatprep.subr.bf16.mxu0 0
    %1018 = vmatpush1.bf16.msra.mxu0 0
    %1019 = vmatprep.subr.bf16.mxu0 0
    %1020 = vmatpush1.bf16.msra.mxu0 0
    %1021 = vmatprep.subr.bf16.mxu0 0
    %1022 = vmatpush1.bf16.msra.mxu0 0
    %1023 = vmatprep.subr.bf16.mxu0 0
    %1024 = vmatpush1.bf16.msra.mxu0 0
    %1025 = vmatprep.subr.bf16.mxu0 0
    %1026 = vmatpush1.bf16.msra.mxu0 0
    %1027 = vmatprep.subr.bf16.mxu0 0
    %1028 = vmatpush1.bf16.msra.mxu0 0
    %1029 = vmatprep.subr.bf16.mxu0 0
    %1030 = vmatpush1.bf16.msra.mxu0 0
    %1031 = vmatprep.mubr.bf16.mxu0 0
    %1032 = vmatmul.mubr.bf16.gmra.mrb[0].mxu0 %v995
    %v1033 = vpop.f32.mrb[0].mxu0
    %v1034 = vadd.f32 0.0, %v1033
    %v1035 = vpop.f32.mrb[0].mxu0
    %v1036 = vpop.f32.mrb[0].mxu0
    %v1037 = vpop.f32.mrb[0].mxu0
    %1038 = vdwg.mxu0
    %v1040 = vsel %vm767, %v765, 0
    %v1042 = vsel %vm771, %v53, 0
    %1044 = vmatprep.subr.bf16.mxu0 0
    %1045 = vmatpush1.bf16.msra.mxu0 %v1042
    %1046 = vmatprep.subr.bf16.mxu0 0
    %1047 = vmatpush1.bf16.msra.mxu0 0
    %1048 = vmatprep.subr.bf16.mxu0 0
    %1049 = vmatpush1.bf16.msra.mxu0 0
    %1050 = vmatprep.subr.bf16.mxu0 0
    %1051 = vmatpush1.bf16.msra.mxu0 0
    %1052 = vmatprep.subr.bf16.mxu0 0
    %1053 = vmatpush1.bf16.msra.mxu0 0
    %1054 = vmatprep.subr.bf16.mxu0 0
    %1055 = vmatpush1.bf16.msra.mxu0 0
    %1056 = vmatprep.subr.bf16.mxu0 0
    %1057 = vmatpush1.bf16.msra.mxu0 0
    %1058 = vmatprep.subr.bf16.mxu0 0
    %1059 = vmatpush1.bf16.msra.mxu0 0
    %1060 = vmatprep.subr.bf16.mxu0 0
    %1061 = vmatpush1.bf16.msra.mxu0 0
    %1062 = vmatprep.subr.bf16.mxu0 0
    %1063 = vmatpush1.bf16.msra.mxu0 0
    %1064 = vmatprep.subr.bf16.mxu0 0
    %1065 = vmatpush1.bf16.msra.mxu0 0
    %1066 = vmatprep.subr.bf16.mxu0 0
    %1067 = vmatpush1.bf16.msra.mxu0 0
    %1068 = vmatprep.subr.bf16.mxu0 0
    %1069 = vmatpush1.bf16.msra.mxu0 0
    %1070 = vmatprep.subr.bf16.mxu0 0
    %1071 = vmatpush1.bf16.msra.mxu0 0
    %1072 = vmatprep.subr.bf16.mxu0 0
    %1073 = vmatpush1.bf16.msra.mxu0 0
    %1074 = vmatprep.subr.bf16.mxu0 0
    %1075 = vmatpush1.bf16.msra.mxu0 0
    %1076 = vmatprep.mubr.bf16.mxu0 0
    %1077 = vmatmul.mubr.bf16.gmra.mrb[0].mxu0 %v1040
    %v1078 = vpop.f32.mrb[0].mxu0
    %v1079 = vadd.f32 0.0, %v1078
    %v1080 = vpop.f32.mrb[0].mxu0
    %v1081 = vpop.f32.mrb[0].mxu0
    %v1082 = vpop.f32.mrb[0].mxu0
    %1083 = vdwg.mxu0
    %v1085 = vsel %vm767, %v766, 0
    %v1087 = vsel %vm771, %v54, 0
    %1089 = vmatprep.subr.bf16.mxu0 0
    %1090 = vmatpush1.bf16.msra.mxu0 %v1087
    %1091 = vmatprep.subr.bf16.mxu0 0
    %1092 = vmatpush1.bf16.msra.mxu0 0
    %1093 = vmatprep.subr.bf16.mxu0 0
    %1094 = vmatpush1.bf16.msra.mxu0 0
    %1095 = vmatprep.subr.bf16.mxu0 0
    %1096 = vmatpush1.bf16.msra.mxu0 0
    %1097 = vmatprep.subr.bf16.mxu0 0
    %1098 = vmatpush1.bf16.msra.mxu0 0
    %1099 = vmatprep.subr.bf16.mxu0 0
    %1100 = vmatpush1.bf16.msra.mxu0 0
    %1101 = vmatprep.subr.bf16.mxu0 0
    %1102 = vmatpush1.bf16.msra.mxu0 0
    %1103 = vmatprep.subr.bf16.mxu0 0
    %1104 = vmatpush1.bf16.msra.mxu0 0
    %1105 = vmatprep.subr.bf16.mxu0 0
    %1106 = vmatpush1.bf16.msra.mxu0 0
    %1107 = vmatprep.subr.bf16.mxu0 0
    %1108 = vmatpush1.bf16.msra.mxu0 0
    %1109 = vmatprep.subr.bf16.mxu0 0
    %1110 = vmatpush1.bf16.msra.mxu0 0
    %1111 = vmatprep.subr.bf16.mxu0 0
    %1112 = vmatpush1.bf16.msra.mxu0 0
    %1113 = vmatprep.subr.bf16.mxu0 0
    %1114 = vmatpush1.bf16.msra.mxu0 0
    %1115 = vmatprep.subr.bf16.mxu0 0
    %1116 = vmatpush1.bf16.msra.mxu0 0
    %1117 = vmatprep.subr.bf16.mxu0 0
    %1118 = vmatpush1.bf16.msra.mxu0 0
    %1119 = vmatprep.subr.bf16.mxu0 0
    %1120 = vmatpush1.bf16.msra.mxu0 0
    %1121 = vmatprep.mubr.bf16.mxu0 0
    %1122 = vmatmul.mubr.bf16.gmra.mrb[0].mxu0 %v1085
    %v1123 = vpop.f32.mrb[0].mxu0
    %v1124 = vadd.f32 0.0, %v1123
    %v1125 = vpop.f32.mrb[0].mxu0
    %v1126 = vpop.f32.mrb[0].mxu0
    %v1127 = vpop.f32.mrb[0].mxu0
    %1128 = vdwg.mxu0
    %v1129 = vadd.f32 %v809, 0.0
    %v1130 = vadd.f32 %v854, 0.0
    %v1131 = vadd.f32 %v899, 0.0
    %v1132 = vadd.f32 %v944, 0.0
    %v1133 = vadd.f32 %v989, 0.0
    %v1134 = vadd.f32 %v1034, 0.0
    %v1135 = vadd.f32 %v1079, 0.0
    %v1136 = vadd.f32 %v1124, 0.0
    %v1137 = vld [vmem:[%s7] sm:$0xf]
    %v1138 = vld [vmem:[%s7 + $0x4] sm:$0xf]
    %v1139 = vld [vmem:[%s7 + $0x8] sm:$0xf]
    %v1140 = vld [vmem:[%s7 + $0xc] sm:$0xf]
    %v1141 = vld [vmem:[%s7 + $0x10] sm:$0xf]
    %v1142 = vld [vmem:[%s7 + $0x14] sm:$0xf]
    %v1143 = vld [vmem:[%s7 + $0x18] sm:$0xf]
    %v1144 = vld [vmem:[%s7 + $0x1c] sm:$0xf]
    %v1145 = vpack.c.bf16 %v211, %v211
    %v1146 = vpack.c.bf16 %v1129, %v1129
    %v1147 = vpack.c.bf16 %v1130, %v1130
    %v1148 = vpack.c.bf16 %v1131, %v1131
    %v1149 = vpack.c.bf16 %v1132, %v1132
    %v1150 = vpack.c.bf16 %v1133, %v1133
    %v1151 = vpack.c.bf16 %v1134, %v1134
    %v1152 = vpack.c.bf16 %v1135, %v1135
    %v1153 = vpack.c.bf16 %v1136, %v1136
    %v1162 = vunpack.c.l.b16 %v1146
    %v1163 = vunpack.c.l.b16 %v1147
    %v1164 = vunpack.c.l.b16 %v1148
    %v1165 = vunpack.c.l.b16 %v1149
    %v1166 = vunpack.c.l.b16 %v1150
    %v1167 = vunpack.c.l.b16 %v1151
    %v1168 = vunpack.c.l.b16 %v1152
    %v1169 = vunpack.c.l.b16 %v1153
    %v1170 = vrot.slane %v1163, 7
    %vm1171 = vcmask 1041409
    %v1172 = vsel %vm1171, %v1170, %v1162
    %v1173 = vrot.slane %v1164, 6
    %vm1174 = vcmask 1042434
    %v1175 = vsel %vm1174, %v1173, %v1172
    %v1176 = vrot.slane %v1165, 5
    %vm1177 = vcmask 1043459
    %v1178 = vsel %vm1177, %v1176, %v1175
    %v1179 = vrot.slane %v1166, 4
    %vm1180 = vcmask 1044484
    %v1181 = vsel %vm1180, %v1179, %v1178
    %v1182 = vrot.slane %v1167, 3
    %vm1183 = vcmask 1045509
    %v1184 = vsel %vm1183, %v1182, %v1181
    %v1185 = vrot.slane %v1168, 2
    %vm1186 = vcmask 1046534
    %v1187 = vsel %vm1186, %v1185, %v1184
    %v1188 = vrot.slane %v1169, 1
    %vm1189 = vcmask 1047559
    %v1190 = vsel %vm1189, %v1188, %v1187
    %v1191 = vpack.c.b16 %v1190, %v1190
    %v1196 = vunpack.c.l.b16 %v1141
    %v1197 = vunpack.c.l.b16 %v1142
    %v1198 = vunpack.c.l.b16 %v1143
    %v1199 = vunpack.c.l.b16 %v1144
    %v1200 = vpack.c.b16 %v1197, %v1196
    %v1201 = vpack.c.b16 %v1199, %v1198
    %v1205 = vsel %vm138, %v1191, 0
    %1207 = vmatprep.subr.bf16.mxu0 0
    %1208 = vmatpush1.bf16.msra.mxu0 %v1200
    %1209 = vmatprep.subr.bf16.mxu0 0
    %1210 = vmatpush1.bf16.msra.mxu0 %v1201
    %1211 = vmatprep.subr.bf16.mxu0 0
    %1212 = vmatpush1.bf16.msra.mxu0 0
    %1213 = vmatprep.subr.bf16.mxu0 0
    %1214 = vmatpush1.bf16.msra.mxu0 0
    %1215 = vmatprep.subr.bf16.mxu0 0
    %1216 = vmatpush1.bf16.msra.mxu0 0
    %1217 = vmatprep.subr.bf16.mxu0 0
    %1218 = vmatpush1.bf16.msra.mxu0 0
    %1219 = vmatprep.subr.bf16.mxu0 0
    %1220 = vmatpush1.bf16.msra.mxu0 0
    %1221 = vmatprep.subr.bf16.mxu0 0
    %1222 = vmatpush1.bf16.msra.mxu0 0
    %1223 = vmatprep.subr.bf16.mxu0 0
    %1224 = vmatpush1.bf16.msra.mxu0 0
    %1225 = vmatprep.subr.bf16.mxu0 0
    %1226 = vmatpush1.bf16.msra.mxu0 0
    %1227 = vmatprep.subr.bf16.mxu0 0
    %1228 = vmatpush1.bf16.msra.mxu0 0
    %1229 = vmatprep.subr.bf16.mxu0 0
    %1230 = vmatpush1.bf16.msra.mxu0 0
    %1231 = vmatprep.subr.bf16.mxu0 0
    %1232 = vmatpush1.bf16.msra.mxu0 0
    %1233 = vmatprep.subr.bf16.mxu0 0
    %1234 = vmatpush1.bf16.msra.mxu0 0
    %1235 = vmatprep.subr.bf16.mxu0 0
    %1236 = vmatpush1.bf16.msra.mxu0 0
    %1237 = vmatprep.subr.bf16.mxu0 0
    %1238 = vmatpush1.bf16.msra.mxu0 0
    %1239 = vmatprep.mubr.bf16.mxu0 0
    %1240 = vmatmul.mubr.bf16.gmra.mrb[0].mxu0 %v1205
    %v1241 = vpop.f32.mrb[0].mxu0
    %v1242 = vadd.f32 0.0, %v1241
    %v1243 = vpop.f32.mrb[0].mxu0
    %v1244 = vpop.f32.mrb[0].mxu0
    %v1245 = vpop.f32.mrb[0].mxu0
    %1246 = vdwg.mxu0
    %1248 = vrot.lane.b32.xlu0 %v1145, 96
    %v1249 = vpop.permute.xlu0 %1248
    %v1254 = vunpack.c.l.b16 %v1137
    %v1255 = vunpack.c.l.b16 %v1138
    %v1256 = vunpack.c.l.b16 %v1139
    %v1257 = vunpack.c.l.b16 %v1140
    %v1258 = vpack.c.b16 %v1255, %v1254
    %v1259 = vpack.c.b16 %v1257, %v1256
    %v1263 = vsel %vm138, %v1249, 0
    %1265 = vmatprep.subr.bf16.mxu0 0
    %1266 = vmatpush1.bf16.msra.mxu0 %v1258
    %1267 = vmatprep.subr.bf16.mxu0 0
    %1268 = vmatpush1.bf16.msra.mxu0 %v1259
    %1269 = vmatprep.subr.bf16.mxu0 0
    %1270 = vmatpush1.bf16.msra.mxu0 0
    %1271 = vmatprep.subr.bf16.mxu0 0
    %1272 = vmatpush1.bf16.msra.mxu0 0
    %1273 = vmatprep.subr.bf16.mxu0 0
    %1274 = vmatpush1.bf16.msra.mxu0 0
    %1275 = vmatprep.subr.bf16.mxu0 0
    %1276 = vmatpush1.bf16.msra.mxu0 0
    %1277 = vmatprep.subr.bf16.mxu0 0
    %1278 = vmatpush1.bf16.msra.mxu0 0
    %1279 = vmatprep.subr.bf16.mxu0 0
    %1280 = vmatpush1.bf16.msra.mxu0 0
    %1281 = vmatprep.subr.bf16.mxu0 0
    %1282 = vmatpush1.bf16.msra.mxu0 0
    %1283 = vmatprep.subr.bf16.mxu0 0
    %1284 = vmatpush1.bf16.msra.mxu0 0
    %1285 = vmatprep.subr.bf16.mxu0 0
    %1286 = vmatpush1.bf16.msra.mxu0 0
    %1287 = vmatprep.subr.bf16.mxu0 0
    %1288 = vmatpush1.bf16.msra.mxu0 0
    %1289 = vmatprep.subr.bf16.mxu0 0
    %1290 = vmatpush1.bf16.msra.mxu0 0
    %1291 = vmatprep.subr.bf16.mxu0 0
    %1292 = vmatpush1.bf16.msra.mxu0 0
    %1293 = vmatprep.subr.bf16.mxu0 0
    %1294 = vmatpush1.bf16.msra.mxu0 0
    %1295 = vmatprep.subr.bf16.mxu0 0
    %1296 = vmatpush1.bf16.msra.mxu0 0
    %1297 = vmatprep.mubr.bf16.mxu0 0
    %1298 = vmatmul.mubr.bf16.gmra.mrb[0].mxu0 %v1263
    %v1299 = vpop.f32.mrb[0].mxu0
    %v1300 = vadd.f32 %v1242, %v1299
    %v1301 = vpop.f32.mrb[0].mxu0
    %v1302 = vpop.f32.mrb[0].mxu0
    %v1303 = vpop.f32.mrb[0].mxu0
    %1304 = vdwg.mxu0
    %v1305 = vld [vmem:[%s8] sm:$0x1]
    %v1307 = vlaneseq
    %v1308 = vshrl.u32 %v1307, 7
    %v1309 = vsub.s32 0, %v1308
    %v1310 = vrot.slane %v1305, %v1309
    %v1312 = vadd.f32 %v1300, %v1310
    %v1313 = vtanh.pop %v1312
    %v1314 = vpack.c.bf16 %v1313, %v1313
    %vm1315 = vcmask 257024
    %1316 = vst.msk [vmem:[#allocation2] sm:$0xf] %vm1315, %v1314
    %1317 = vrot.lane.b32.xlu0 %v211, 96
    %v1318 = vpop.permute.xlu0 %1317
    %1320 = vst.msk [vmem:[%s12] sm:$0xff] %vm138, %v1318
  $region49: #{decoder_forward.1} parent=0 // pred_fallthru
    _
  %v1321 = vld [vmem:[#allocation2] sm:$0xf]
  %v1322 = vld [vmem:[%s9] sm:$0xf]
  %v1323 = vld [vmem:[%s9 + $0x4] sm:$0xf]
  %v1324 = vld [vmem:[%s9 + $0x8] sm:$0xf]
  %v1325 = vld [vmem:[%s9 + $0xc] sm:$0xf]
  %v1326 = vld [vmem:[%s10] sm:$0x1]
  %v1328 = vlaneseq
  %v1329 = vshrl.u32 %v1328, 7
  %v1330 = vsub.s32 0, %v1329
  %v1331 = vrot.slane %v1326, %v1330
  %v1337 = vunpack.c.l.b16 %v1322
  %v1338 = vunpack.c.l.b16 %v1323
  %v1339 = vunpack.c.l.b16 %v1324
  %v1340 = vunpack.c.l.b16 %v1325
  %v1341 = vpack.c.b16 %v1338, %v1337
  %v1342 = vpack.c.b16 %v1340, %v1339
  %vm1345 = vcmask 261120
  %v1347 = vsel %vm1345, %v1321, 0
  %1349 = vmatprep.subr.bf16.mxu0 0
  %1350 = vmatpush1.bf16.msra.mxu0 %v1341
  %1351 = vmatprep.subr.bf16.mxu0 0
  %1352 = vmatpush1.bf16.msra.mxu0 %v1342
  %1353 = vmatprep.subr.bf16.mxu0 0
  %1354 = vmatpush1.bf16.msra.mxu0 0
  %1355 = vmatprep.subr.bf16.mxu0 0
  %1356 = vmatpush1.bf16.msra.mxu0 0
  %1357 = vmatprep.subr.bf16.mxu0 0
  %1358 = vmatpush1.bf16.msra.mxu0 0
  %1359 = vmatprep.subr.bf16.mxu0 0
  %1360 = vmatpush1.bf16.msra.mxu0 0
  %1361 = vmatprep.subr.bf16.mxu0 0
  %1362 = vmatpush1.bf16.msra.mxu0 0
  %1363 = vmatprep.subr.bf16.mxu0 0
  %1364 = vmatpush1.bf16.msra.mxu0 0
  %1365 = vmatprep.subr.bf16.mxu0 0
  %1366 = vmatpush1.bf16.msra.mxu0 0
  %1367 = vmatprep.subr.bf16.mxu0 0
  %1368 = vmatpush1.bf16.msra.mxu0 0
  %1369 = vmatprep.subr.bf16.mxu0 0
  %1370 = vmatpush1.bf16.msra.mxu0 0
  %1371 = vmatprep.subr.bf16.mxu0 0
  %1372 = vmatpush1.bf16.msra.mxu0 0
  %1373 = vmatprep.subr.bf16.mxu0 0
  %1374 = vmatpush1.bf16.msra.mxu0 0
  %1375 = vmatprep.subr.bf16.mxu0 0
  %1376 = vmatpush1.bf16.msra.mxu0 0
  %1377 = vmatprep.subr.bf16.mxu0 0
  %1378 = vmatpush1.bf16.msra.mxu0 0
  %1379 = vmatprep.subr.bf16.mxu0 0
  %1380 = vmatpush1.bf16.msra.mxu0 0
  %1381 = vmatprep.mubr.bf16.mxu0 0
  %1382 = vmatmul.mubr.bf16.gmra.mrb[0].mxu0 %v1347
  %v1383 = vpop.f32.mrb[0].mxu0
  %v1384 = vadd.f32 %v1331, %v1383
  %v1385 = vpop.f32.mrb[0].mxu0
  %v1386 = vpop.f32.mrb[0].mxu0
  %v1387 = vpop.f32.mrb[0].mxu0
  %1388 = vdwg.mxu0
  %vm1389 = vcmask 523264
  %1390 = vst.msk [vmem:[%s11] sm:$0xff] %vm1389, %v1384
  // Predicated region
  $region50: #{decoder_forward.1} parent=0 // pred_check
    _
  $region51: #{decoder_forward.1} parent=0 // pred_check_branch
    %1392 = sbr.rel (0) target = $region53
  $region52: #{decoder_forward.1} parent=0 // pred_region
    _
  $region53: #{decoder_forward.1} parent=0 // pred_fallthru
    _
  // Predicated region
  $region54: #{decoder_forward.1} parent=0 // pred_check
    _
  $region55: #{decoder_forward.1} parent=0 // pred_check_branch
    %1394 = sbr.rel (0) target = $region57
  $region56: #{decoder_forward.1} parent=0 // pred_region
    _
  $region57: #{decoder_forward.1} parent=0 // pred_fallthru
    _
  // Predicated region
  $region58: #{decoder_forward.1} parent=0 // pred_check
    _
  $region59: #{decoder_forward.1} parent=0 // pred_check_branch
    %1396 = sbr.rel (0) target = $region61
  $region60: #{decoder_forward.1} parent=0 // pred_region
    _
  $region61: #{decoder_forward.1} parent=0 // pred_fallthru
    _
  // Predicated region
  $region62: #{decoder_forward.1} parent=0 // pred_check
    _
  $region63: #{decoder_forward.1} parent=0 // pred_check_branch
    %1398 = sbr.rel (0) target = $region65
  $region64: #{decoder_forward.1} parent=0 // pred_region
    _
  $region65: #{decoder_forward.1} parent=0 // pred_fallthru
    _

</llo_original>
